<compile_context>
chip_gen: v6e
topology: v6e:2x2x1
jax: 0.10.0
libtpu: 0.0.40
codegen_flags: <defaults>
</compile_context>

<pallas_src>
import jax
import jax.numpy as jnp
import numpy as np
from jax.experimental import pallas as pl
from jax.experimental.pallas import tpu as pltpu

# ---- synthetic config (small, consistent with the module's __init__) ----
HIDDEN = 32          # config.hidden_size
D_INT = 64           # config.intermediate_size
N_STATE = 16         # config.state_size
K_CONV = 4           # config.conv_kernel
DT_RANK = 8          # config.time_step_rank
BATCH = 2
SEQ = 8

# layout of the packed parameter slab (rows, all D_INT lanes wide):
#   rows [0, K)            : conv1d.weight[:, 0, :].T           (K, D)
#   row  K                 : conv1d.bias                         (1, D)
#   row  K+1               : dt_proj.bias                        (1, D)
#   row  K+2               : D (skip)                            (1, D)
#   rows [A_ROW0, A_ROW0+N): A_log.T                             (N, D)
_VEC_ROWS = K_CONV + 3
A_ROW0 = ((_VEC_ROWS + 7) // 8) * 8          # sublane-aligned start of A_log.T
SLAB_ROWS = A_ROW0 + N_STATE


def mamba_mixer_kernel(x_ref, w_in_ref, w_u_ref, slab_ref, w_out_ref, o_ref,
                       dA_ref, dBu_ref, c_ref, y_ref):
    """One grid step = one batch element.

    x_ref:     (L, H)          this batch's hidden_states rows
    w_in_ref:  (H, 2D)         in_proj.weight.T (fused hs|gate)
    w_u_ref:   (D, D+2N)       [ (dt_proj.W @ x_proj.W[:R]).T | W_B.T | W_C.T ]
    slab_ref:  (SLAB_ROWS, D)  packed small params (see layout above)
    w_out_ref: (D, H)          out_proj.weight.T
    o_ref:     (L, H)
    scratch:   dA/dBu/c (L, N, D), y (L, D) in VMEM
    """
    L, D, N, K = SEQ, D_INT, N_STATE, K_CONV

    x = x_ref[...]                                                        # (L, H)

    # ---- fused in_proj (single MXU push, lane-dense 128-wide result) ------
    proj = jnp.dot(x, w_in_ref[...], preferred_element_type=jnp.float32)  # (L, 2D)
    hs = proj[:, :D]                                                      # (L, D)
    gate = proj[:, D:]                                                    # (L, D)

    w_conv = slab_ref[0:K, :]                                             # (K, D)
    b_conv = slab_ref[K:K + 1, :]                                         # (1, D)
    b_dt = slab_ref[K + 1:K + 2, :]                                       # (1, D)
    d_skip = slab_ref[K + 2:K + 3, :]                                     # (1, D)
    a_t = slab_ref[A_ROW0:A_ROW0 + N, :]                                  # (N, D)

    # ---- causal depthwise conv1d + SiLU -------------------------------------
    # conv[t] = b + sum_j w[K-1-j] * hs[t-j]  (zero for t < j); shifted views via
    # XLU sublane rolls + iota mask (no padded buffer straddling sublane tiles).
    row_ids = jax.lax.broadcasted_iota(jnp.int32, (L, D), 0)
    conv = jnp.broadcast_to(b_conv, (L, D))
    for j in range(K):                                                    # static, tiny
        if j == 0:
            shifted = hs
        else:
            shifted = pltpu.roll(hs, shift=j, axis=0)
            shifted = jnp.where(row_ids >= j, shifted, 0.0)
        conv = conv + shifted * w_conv[K - 1 - j:K - j, :]
    u = conv * jax.nn.sigmoid(conv)                                       # SiLU, (L, D)

    # ---- fused delta / B / C projection (one MXU push) ----------------------
    ssm = jnp.dot(u, w_u_ref[...], preferred_element_type=jnp.float32)    # (L, D+2N)
    delta = jax.nn.softplus(ssm[:, :D] + b_dt)                            # (L, D)
    Bc = ssm[:, D:D + N].T                                                # (N, L)
    Cc = ssm[:, D + N:D + 2 * N].T                                        # (N, L)
    du = delta * u                                                        # (L, D)

    neg_A = -jnp.exp(a_t)                                                 # (N, D)

    # ---- hoist exp + lane/sublane broadcasts OUT of the serial recurrence ----
    # (independent per timestep -> pipelines on EUP/XLU; scan loop below is pure VALU)
    for t in range(L):                                                    # static prep loop
        dA_ref[t] = jnp.exp(neg_A * delta[t:t + 1, :])                    # (N, D)
        dBu_ref[t] = Bc[:, t:t + 1] * du[t:t + 1, :]                      # (N, D)
        c_ref[t] = jnp.broadcast_to(Cc[:, t:t + 1], (N, D))               # (N, D)

    # ---- selective scan: serial part is state = dA*state + dBu + C-reduce ----
    def scan_step(t, state):
        state = dA_ref[t] * state + dBu_ref[t]
        y_ref[pl.ds(t, 1), :] = jnp.sum(state * c_ref[t], axis=0, keepdims=True)
        return state

    jax.lax.fori_loop(0, L, scan_step,
                      jnp.zeros((N, D), jnp.float32), unroll=True)

    # ---- D skip + SiLU gate + out_proj --------------------------------------
    y = y_ref[...] + u * d_skip
    y = y * (gate * jax.nn.sigmoid(gate))
    o_ref[...] = jnp.dot(y, w_out_ref[...],
                         preferred_element_type=jnp.float32).astype(o_ref.dtype)


def mamba_mixer_forward(x, params):
    """params are in natural PyTorch layouts; all layout glue / packing is host-side."""
    (w_in, w_conv, b_conv, w_x, w_dt, b_dt, a_log, d_param, w_out) = params
    B, L, H = x.shape
    D, N, R, K = D_INT, N_STATE, DT_RANK, K_CONV

    # host-side pre-transposition / fusion (exact, zero in-kernel cost)
    w_in_t = w_in.T                                       # (H, 2D)  fused hs|gate
    w_delta_t = (w_dt @ w_x[:R]).T                        # (D, D)   dt_proj folded into x_proj
    w_b_t = w_x[R:R + N].T                                # (D, N)
    w_c_t = w_x[R + N:].T                                 # (D, N)
    w_u_t = jnp.concatenate([w_delta_t, w_b_t, w_c_t], axis=1)   # (D, D+2N)
    w_out_t = w_out.T                                     # (D, H)

    # packed small-parameter slab: one DMA instead of six
    slab = jnp.concatenate([
        w_conv.T,                                         # (K, D)
        b_conv[None, :],                                  # (1, D)
        b_dt[None, :],                                    # (1, D)
        d_param[None, :],                                 # (1, D)
        jnp.zeros((A_ROW0 - _VEC_ROWS, D), jnp.float32),  # pad to sublane boundary
        a_log.T,                                          # (N, D)
    ], axis=0)                                            # (SLAB_ROWS, D)

    args = (x.reshape(B * L, H).astype(jnp.float32), w_in_t, w_u_t, slab, w_out_t)

    grid_spec = pltpu.PrefetchScalarGridSpec(
        num_scalar_prefetch=0,
        grid=(B,),                                        # one grid step per batch element
        in_specs=[
            pl.BlockSpec((L, H), lambda b: (b, 0)),       # per-batch token rows
            pl.BlockSpec(w_in_t.shape, lambda b: (0, 0)),   # weights: constant index_map
            pl.BlockSpec(w_u_t.shape, lambda b: (0, 0)),    #  -> stay resident, no re-DMA
            pl.BlockSpec(slab.shape, lambda b: (0, 0)),
            pl.BlockSpec(w_out_t.shape, lambda b: (0, 0)),
        ],
        out_specs=pl.BlockSpec((L, H), lambda b: (b, 0)),
        scratch_shapes=[
            pltpu.VMEM((L, N_STATE, D), jnp.float32),     # dA  per timestep
            pltpu.VMEM((L, N_STATE, D), jnp.float32),     # dBu per timestep
            pltpu.VMEM((L, N_STATE, D), jnp.float32),     # C broadcast per timestep
            pltpu.VMEM((L, D), jnp.float32),              # per-step scan outputs
        ],
    )
    out = pl.pallas_call(
        mamba_mixer_kernel,
        out_shape=jax.ShapeDtypeStruct((B * L, H), jnp.float32),
        grid_spec=grid_spec,
        compiler_params=pltpu.CompilerParams(dimension_semantics=("parallel",)),
    )(*args)
    return out.reshape(B, L, H)


# ---- pure-JAX reference (mirrors PyTorch slow_forward, no cache, no module) ----
def reference_forward(x, params):
    (w_in, w_conv, b_conv, w_x, w_dt, b_dt, a_log, d_param, w_out) = params
    B, L, H = x.shape
    proj = x @ w_in.T                                                # (B, L, 2D)
    hs, gate = proj[..., :D_INT], proj[..., D_INT:]
    w_conv_t = w_conv.T                                              # (K, D)
    hs_pad = jnp.pad(hs, ((0, 0), (K_CONV - 1, 0), (0, 0)))
    conv = sum(hs_pad[:, k:k + L, :] * w_conv_t[k][None, None, :] for k in range(K_CONV))
    conv = conv + b_conv[None, None, :]
    u = jax.nn.silu(conv)
    ssm_p = u @ w_x.T
    ts = ssm_p[..., :DT_RANK]
    Bm = ssm_p[..., DT_RANK:DT_RANK + N_STATE]
    Cm = ssm_p[..., DT_RANK + N_STATE:]
    delta = jax.nn.softplus(ts @ w_dt.T + b_dt[None, None, :])
    A = -jnp.exp(a_log)
    dA = jnp.exp(delta[..., None] * A[None, None])                   # (B, L, D, N)
    dBu = (delta * u)[..., None] * Bm[:, :, None, :]

    def step(state, inp):
        dA_t, dBu_t, C_t = inp
        state = dA_t * state + dBu_t
        yt = jnp.sum(state * C_t[:, None, :], axis=-1)
        return state, yt

    state0 = jnp.zeros((B, D_INT, N_STATE), jnp.float32)
    _, ysc = jax.lax.scan(step, state0,
                          (dA.transpose(1, 0, 2, 3), dBu.transpose(1, 0, 2, 3),
                           Cm.transpose(1, 0, 2)))
    y = ysc.transpose(1, 0, 2)                                       # (B, L, D)
    y = y + u * d_param[None, None, :]
    y = y * jax.nn.silu(gate)
    return y @ w_out.T


def make_params(key):
    ks = jax.random.split(key, 7)
    scale = 0.1
    w_in = scale * jax.random.normal(ks[0], (2 * D_INT, HIDDEN), jnp.float32)
    w_conv = scale * jax.random.normal(ks[1], (D_INT, K_CONV), jnp.float32)  # conv1d.weight[:,0,:]
    b_conv = scale * jax.random.normal(ks[2], (D_INT,), jnp.float32)
    w_x = scale * jax.random.normal(ks[3], (DT_RANK + 2 * N_STATE, D_INT), jnp.float32)
    w_dt = scale * jax.random.normal(ks[4], (D_INT, DT_RANK), jnp.float32)
    b_dt = scale * jax.random.normal(ks[5], (D_INT,), jnp.float32)
    a_log = jnp.log(jnp.broadcast_to(
        jnp.arange(1, N_STATE + 1, dtype=jnp.float32)[None, :], (D_INT, N_STATE)))
    d_param = jnp.ones((D_INT,), jnp.float32)
    w_out = scale * jax.random.normal(ks[6], (HIDDEN, D_INT), jnp.float32)
    return (w_in, w_conv, b_conv, w_x, w_dt, b_dt, a_log, d_param, w_out)


if __name__ == "__main__":
    key = jax.random.PRNGKey(0)
    kx, kp = jax.random.split(key)
    x = jax.random.normal(kx, (BATCH, SEQ, HIDDEN), jnp.float32)
    params = make_params(kp)

    out = mamba_mixer_forward(x, params)
    out = jax.block_until_ready(out)

    ref = reference_forward(x, params)
    np.testing.assert_allclose(np.asarray(out), np.asarray(ref), rtol=2e-3, atol=2e-3)

    print("KERNEL_OK")
</pallas_src>

<mosaic_0001>
module attributes {stable_mosaic.version = 11 : i64} {
  func.func @mamba_mixer_kernel(%arg0: i32, %arg1: memref<8x32xf32, #tpu.memory_space<vmem>>, %arg2: memref<32x128xf32, #tpu.memory_space<vmem>>, %arg3: memref<64x96xf32, #tpu.memory_space<vmem>>, %arg4: memref<24x64xf32, #tpu.memory_space<vmem>>, %arg5: memref<64x32xf32, #tpu.memory_space<vmem>>, %arg6: memref<8x32xf32, #tpu.memory_space<vmem>>, %arg7: memref<8x16x64xf32, #tpu.memory_space<vmem>>, %arg8: memref<8x16x64xf32, #tpu.memory_space<vmem>>, %arg9: memref<8x16x64xf32, #tpu.memory_space<vmem>>, %arg10: memref<8x64xf32, #tpu.memory_space<vmem>>) attributes {dimension_semantics = [#tpu.dimension_semantics<parallel>], iteration_bounds = array<i64: 2>, scalar_prefetch = 0 : i64, scratch_operands = 4 : i64, tpu.core_type = #tpu.core_type<tc>, window_params = [{transform_indices = @transform_0, window_bounds = array<i64: 8, 32>}, {pipeline_mode = #tpu.pipeline_mode<synchronous>, transform_indices = @transform_1, window_bounds = array<i64: 32, 128>}, {pipeline_mode = #tpu.pipeline_mode<synchronous>, transform_indices = @transform_2, window_bounds = array<i64: 64, 96>}, {pipeline_mode = #tpu.pipeline_mode<synchronous>, transform_indices = @transform_3, window_bounds = array<i64: 24, 64>}, {pipeline_mode = #tpu.pipeline_mode<synchronous>, transform_indices = @transform_4, window_bounds = array<i64: 64, 32>}, {transform_indices = @transform_5, window_bounds = array<i64: 8, 32>}]} {
    %c0 = arith.constant 0 : index
    %c0_0 = arith.constant 0 : index
    %0 = vector.load %arg1[%c0, %c0_0] : memref<8x32xf32, #tpu.memory_space<vmem>>, vector<8x32xf32>
    %c0_1 = arith.constant 0 : index
    %c0_2 = arith.constant 0 : index
    %1 = vector.load %arg2[%c0_1, %c0_2] : memref<32x128xf32, #tpu.memory_space<vmem>>, vector<32x128xf32>
    %cst = arith.constant dense<0.000000e+00> : vector<8x128xf32>
    %2 = tpu.matmul %0, %1, %cst {dimension_numbers = #tpu.dot_dimension_numbers<[1], [0], [0], [1], [0, 0, 1, 1], [], []>} : vector<8x32xf32>, vector<32x128xf32>, vector<8x128xf32> -> vector<8x128xf32>
    %3 = vector.extract_strided_slice %2 {offsets = [0, 0], sizes = [8, 64], strides = [1, 1]} : vector<8x128xf32> to vector<8x64xf32>
    %4 = vector.extract_strided_slice %2 {offsets = [0, 64], sizes = [8, 64], strides = [1, 1]} : vector<8x128xf32> to vector<8x64xf32>
    %c0_3 = arith.constant 0 : index
    %c0_4 = arith.constant 0 : index
    %5 = vector.load %arg4[%c0_3, %c0_4] : memref<24x64xf32, #tpu.memory_space<vmem>>, vector<4x64xf32>
    %c4 = arith.constant 4 : index
    %c0_5 = arith.constant 0 : index
    %6 = vector.load %arg4[%c4, %c0_5] : memref<24x64xf32, #tpu.memory_space<vmem>>, vector<1x64xf32>
    %c5 = arith.constant 5 : index
    %c0_6 = arith.constant 0 : index
    %7 = vector.load %arg4[%c5, %c0_6] : memref<24x64xf32, #tpu.memory_space<vmem>>, vector<1x64xf32>
    %c6 = arith.constant 6 : index
    %c0_7 = arith.constant 0 : index
    %8 = vector.load %arg4[%c6, %c0_7] : memref<24x64xf32, #tpu.memory_space<vmem>>, vector<1x64xf32>
    %c8 = arith.constant 8 : index
    %c0_8 = arith.constant 0 : index
    %9 = vector.load %arg4[%c8, %c0_8] : memref<24x64xf32, #tpu.memory_space<vmem>>, vector<16x64xf32>
    %10 = tpu.iota {dimensions = array<i32: 0>} : vector<8x64xi32>
    %11 = vector.shape_cast %6 : vector<1x64xf32> to vector<1x64xf32>
    %12 = vector.broadcast %11 : vector<1x64xf32> to vector<8x64xf32>
    %13 = vector.extract_strided_slice %5 {offsets = [3, 0], sizes = [1, 64], strides = [1, 1]} : vector<4x64xf32> to vector<1x64xf32>
    %14 = vector.broadcast %13 : vector<1x64xf32> to vector<8x64xf32>
    %15 = arith.mulf %3, %14 : vector<8x64xf32>
    %16 = arith.addf %12, %15 : vector<8x64xf32>
    %c1_i32 = arith.constant 1 : i32
    %17 = tpu.dynamic_rotate %3 by %c1_i32 dim 0 : vector<8x64xf32>, i32 -> vector<8x64xf32>
    %c1_i32_9 = arith.constant 1 : i32
    %18 = vector.broadcast %c1_i32_9 : i32 to vector<8x64xi32>
    %19 = arith.cmpi sge, %10, %18 : vector<8x64xi32>
    %cst_10 = arith.constant 0.000000e+00 : f32
    %20 = vector.broadcast %cst_10 : f32 to vector<8x64xf32>
    %21 = arith.select %19, %17, %20 : vector<8x64xi1>, vector<8x64xf32>
    %22 = vector.extract_strided_slice %5 {offsets = [2, 0], sizes = [1, 64], strides = [1, 1]} : vector<4x64xf32> to vector<1x64xf32>
    %23 = vector.broadcast %22 : vector<1x64xf32> to vector<8x64xf32>
    %24 = arith.mulf %21, %23 : vector<8x64xf32>
    %25 = arith.addf %16, %24 : vector<8x64xf32>
    %c2_i32 = arith.constant 2 : i32
    %26 = tpu.dynamic_rotate %3 by %c2_i32 dim 0 : vector<8x64xf32>, i32 -> vector<8x64xf32>
    %c2_i32_11 = arith.constant 2 : i32
    %27 = vector.broadcast %c2_i32_11 : i32 to vector<8x64xi32>
    %28 = arith.cmpi sge, %10, %27 : vector<8x64xi32>
    %cst_12 = arith.constant 0.000000e+00 : f32
    %29 = vector.broadcast %cst_12 : f32 to vector<8x64xf32>
    %30 = arith.select %28, %26, %29 : vector<8x64xi1>, vector<8x64xf32>
    %31 = vector.extract_strided_slice %5 {offsets = [1, 0], sizes = [1, 64], strides = [1, 1]} : vector<4x64xf32> to vector<1x64xf32>
    %32 = vector.broadcast %31 : vector<1x64xf32> to vector<8x64xf32>
    %33 = arith.mulf %30, %32 : vector<8x64xf32>
    %34 = arith.addf %25, %33 : vector<8x64xf32>
    %c3_i32 = arith.constant 3 : i32
    %35 = tpu.dynamic_rotate %3 by %c3_i32 dim 0 : vector<8x64xf32>, i32 -> vector<8x64xf32>
    %c3_i32_13 = arith.constant 3 : i32
    %36 = vector.broadcast %c3_i32_13 : i32 to vector<8x64xi32>
    %37 = arith.cmpi sge, %10, %36 : vector<8x64xi32>
    %cst_14 = arith.constant 0.000000e+00 : f32
    %38 = vector.broadcast %cst_14 : f32 to vector<8x64xf32>
    %39 = arith.select %37, %35, %38 : vector<8x64xi1>, vector<8x64xf32>
    %40 = vector.extract_strided_slice %5 {offsets = [0, 0], sizes = [1, 64], strides = [1, 1]} : vector<4x64xf32> to vector<1x64xf32>
    %41 = vector.broadcast %40 : vector<1x64xf32> to vector<8x64xf32>
    %42 = arith.mulf %39, %41 : vector<8x64xf32>
    %43 = arith.addf %34, %42 : vector<8x64xf32>
    %44 = arith.negf %43 : vector<8x64xf32>
    %45 = math.exp %44 : vector<8x64xf32>
    %cst_15 = arith.constant 1.000000e+00 : f32
    %46 = vector.broadcast %cst_15 : f32 to vector<8x64xf32>
    %47 = arith.addf %46, %45 : vector<8x64xf32>
    %48 = arith.divf %46, %47 : vector<8x64xf32>
    %49 = arith.mulf %43, %48 : vector<8x64xf32>
    %c0_16 = arith.constant 0 : index
    %c0_17 = arith.constant 0 : index
    %50 = vector.load %arg3[%c0_16, %c0_17] : memref<64x96xf32, #tpu.memory_space<vmem>>, vector<64x96xf32>
    %cst_18 = arith.constant dense<0.000000e+00> : vector<8x96xf32>
    %51 = tpu.matmul %49, %50, %cst_18 {dimension_numbers = #tpu.dot_dimension_numbers<[1], [0], [0], [1], [0, 0, 1, 1], [], []>} : vector<8x64xf32>, vector<64x96xf32>, vector<8x96xf32> -> vector<8x96xf32>
    %52 = vector.extract_strided_slice %51 {offsets = [0, 0], sizes = [8, 64], strides = [1, 1]} : vector<8x96xf32> to vector<8x64xf32>
    %53 = vector.broadcast %7 : vector<1x64xf32> to vector<8x64xf32>
    %54 = arith.addf %52, %53 : vector<8x64xf32>
    %cst_19 = arith.constant 0.000000e+00 : f32
    %55 = vector.broadcast %cst_19 : f32 to vector<8x64xf32>
    %56 = arith.maximumf %54, %55 : vector<8x64xf32>
    %57 = vector.broadcast %cst_19 : f32 to vector<8x64xf32>
    %58 = arith.subf %54, %57 : vector<8x64xf32>
    %59 = arith.cmpf one, %58, %58 : vector<8x64xf32>
    %60 = vector.broadcast %cst_19 : f32 to vector<8x64xf32>
    %61 = arith.addf %54, %60 : vector<8x64xf32>
    %62 = math.absf %58 : vector<8x64xf32>
    %cst_20 = arith.constant 0.000000e+00 : f32
    %63 = vector.broadcast %cst_20 : f32 to vector<8x64xf32>
    %64 = arith.subf %63, %62 : vector<8x64xf32>
    %65 = math.exp %64 : vector<8x64xf32>
    %66 = math.log1p %65 : vector<8x64xf32>
    %67 = arith.addf %56, %66 : vector<8x64xf32>
    %68 = arith.select %59, %61, %67 : vector<8x64xi1>, vector<8x64xf32>
    %69 = vector.extract_strided_slice %51 {offsets = [0, 64], sizes = [8, 16], strides = [1, 1]} : vector<8x96xf32> to vector<8x16xf32>
    %70 = tpu.transpose %69, [1, 0] : vector<8x16xf32> -> vector<16x8xf32>
    %71 = vector.extract_strided_slice %51 {offsets = [0, 80], sizes = [8, 16], strides = [1, 1]} : vector<8x96xf32> to vector<8x16xf32>
    %72 = tpu.transpose %71, [1, 0] : vector<8x16xf32> -> vector<16x8xf32>
    %73 = arith.mulf %68, %49 : vector<8x64xf32>
    %74 = math.exp %9 : vector<16x64xf32>
    %cst_21 = arith.constant 0.000000e+00 : f32
    %75 = vector.broadcast %cst_21 : f32 to vector<16x64xf32>
    %76 = arith.subf %75, %74 : vector<16x64xf32>
    %77 = vector.extract_strided_slice %68 {offsets = [0, 0], sizes = [1, 64], strides = [1, 1]} : vector<8x64xf32> to vector<1x64xf32>
    %78 = vector.broadcast %77 : vector<1x64xf32> to vector<16x64xf32>
    %79 = arith.mulf %76, %78 : vector<16x64xf32>
    %80 = math.exp %79 : vector<16x64xf32>
    %c0_22 = arith.constant 0 : index
    %c0_23 = arith.constant 0 : index
    %c0_24 = arith.constant 0 : index
    %81 = vector.load %arg7[%c0_22, %c0_23, %c0_24] : memref<8x16x64xf32, #tpu.memory_space<vmem>>, vector<1x16x64xf32>
    %82 = vector.shape_cast %81 : vector<1x16x64xf32> to vector<16x64xf32>
    %83 = vector.shape_cast %80 : vector<16x64xf32> to vector<1x16x64xf32>
    tpu.vector_store %arg7[%c0_22, %c0_23, %c0_24], %83 {strides = array<i32>} : memref<8x16x64xf32, #tpu.memory_space<vmem>>, vector<1x16x64xf32>,
    %84 = vector.extract_strided_slice %70 {offsets = [0, 0], sizes = [16, 1], strides = [1, 1]} : vector<16x8xf32> to vector<16x1xf32>
    %85 = vector.extract_strided_slice %73 {offsets = [0, 0], sizes = [1, 64], strides = [1, 1]} : vector<8x64xf32> to vector<1x64xf32>
    %86 = vector.broadcast %84 : vector<16x1xf32> to vector<16x64xf32>
    %87 = vector.broadcast %85 : vector<1x64xf32> to vector<16x64xf32>
    %88 = arith.mulf %86, %87 : vector<16x64xf32>
    %c0_25 = arith.constant 0 : index
    %c0_26 = arith.constant 0 : index
    %c0_27 = arith.constant 0 : index
    %89 = vector.load %arg8[%c0_25, %c0_26, %c0_27] : memref<8x16x64xf32, #tpu.memory_space<vmem>>, vector<1x16x64xf32>
    %90 = vector.shape_cast %89 : vector<1x16x64xf32> to vector<16x64xf32>
    %91 = vector.shape_cast %88 : vector<16x64xf32> to vector<1x16x64xf32>
    tpu.vector_store %arg8[%c0_25, %c0_26, %c0_27], %91 {strides = array<i32>} : memref<8x16x64xf32, #tpu.memory_space<vmem>>, vector<1x16x64xf32>,
    %92 = vector.extract_strided_slice %72 {offsets = [0, 0], sizes = [16, 1], strides = [1, 1]} : vector<16x8xf32> to vector<16x1xf32>
    %93 = vector.shape_cast %92 : vector<16x1xf32> to vector<16x1xf32>
    %94 = vector.broadcast %93 : vector<16x1xf32> to vector<16x64xf32>
    %c0_28 = arith.constant 0 : index
    %c0_29 = arith.constant 0 : index
    %c0_30 = arith.constant 0 : index
    %95 = vector.load %arg9[%c0_28, %c0_29, %c0_30] : memref<8x16x64xf32, #tpu.memory_space<vmem>>, vector<1x16x64xf32>
    %96 = vector.shape_cast %95 : vector<1x16x64xf32> to vector<16x64xf32>
    %97 = vector.shape_cast %94 : vector<16x64xf32> to vector<1x16x64xf32>
    tpu.vector_store %arg9[%c0_28, %c0_29, %c0_30], %97 {strides = array<i32>} : memref<8x16x64xf32, #tpu.memory_space<vmem>>, vector<1x16x64xf32>,
    %98 = vector.extract_strided_slice %68 {offsets = [1, 0], sizes = [1, 64], strides = [1, 1]} : vector<8x64xf32> to vector<1x64xf32>
    %99 = vector.broadcast %98 : vector<1x64xf32> to vector<16x64xf32>
    %100 = arith.mulf %76, %99 : vector<16x64xf32>
    %101 = math.exp %100 : vector<16x64xf32>
    %c1 = arith.constant 1 : index
    %c0_31 = arith.constant 0 : index
    %c0_32 = arith.constant 0 : index
    %102 = vector.load %arg7[%c1, %c0_31, %c0_32] : memref<8x16x64xf32, #tpu.memory_space<vmem>>, vector<1x16x64xf32>
    %103 = vector.shape_cast %102 : vector<1x16x64xf32> to vector<16x64xf32>
    %104 = vector.shape_cast %101 : vector<16x64xf32> to vector<1x16x64xf32>
    tpu.vector_store %arg7[%c1, %c0_31, %c0_32], %104 {strides = array<i32>} : memref<8x16x64xf32, #tpu.memory_space<vmem>>, vector<1x16x64xf32>,
    %105 = vector.extract_strided_slice %70 {offsets = [0, 1], sizes = [16, 1], strides = [1, 1]} : vector<16x8xf32> to vector<16x1xf32>
    %106 = vector.extract_strided_slice %73 {offsets = [1, 0], sizes = [1, 64], strides = [1, 1]} : vector<8x64xf32> to vector<1x64xf32>
    %107 = vector.broadcast %105 : vector<16x1xf32> to vector<16x64xf32>
    %108 = vector.broadcast %106 : vector<1x64xf32> to vector<16x64xf32>
    %109 = arith.mulf %107, %108 : vector<16x64xf32>
    %c1_33 = arith.constant 1 : index
    %c0_34 = arith.constant 0 : index
    %c0_35 = arith.constant 0 : index
    %110 = vector.load %arg8[%c1_33, %c0_34, %c0_35] : memref<8x16x64xf32, #tpu.memory_space<vmem>>, vector<1x16x64xf32>
    %111 = vector.shape_cast %110 : vector<1x16x64xf32> to vector<16x64xf32>
    %112 = vector.shape_cast %109 : vector<16x64xf32> to vector<1x16x64xf32>
    tpu.vector_store %arg8[%c1_33, %c0_34, %c0_35], %112 {strides = array<i32>} : memref<8x16x64xf32, #tpu.memory_space<vmem>>, vector<1x16x64xf32>,
    %113 = vector.extract_strided_slice %72 {offsets = [0, 1], sizes = [16, 1], strides = [1, 1]} : vector<16x8xf32> to vector<16x1xf32>
    %114 = vector.shape_cast %113 : vector<16x1xf32> to vector<16x1xf32>
    %115 = vector.broadcast %114 : vector<16x1xf32> to vector<16x64xf32>
    %c1_36 = arith.constant 1 : index
    %c0_37 = arith.constant 0 : index
    %c0_38 = arith.constant 0 : index
    %116 = vector.load %arg9[%c1_36, %c0_37, %c0_38] : memref<8x16x64xf32, #tpu.memory_space<vmem>>, vector<1x16x64xf32>
    %117 = vector.shape_cast %116 : vector<1x16x64xf32> to vector<16x64xf32>
    %118 = vector.shape_cast %115 : vector<16x64xf32> to vector<1x16x64xf32>
    tpu.vector_store %arg9[%c1_36, %c0_37, %c0_38], %118 {strides = array<i32>} : memref<8x16x64xf32, #tpu.memory_space<vmem>>, vector<1x16x64xf32>,
    %119 = vector.extract_strided_slice %68 {offsets = [2, 0], sizes = [1, 64], strides = [1, 1]} : vector<8x64xf32> to vector<1x64xf32>
    %120 = vector.broadcast %119 : vector<1x64xf32> to vector<16x64xf32>
    %121 = arith.mulf %76, %120 : vector<16x64xf32>
    %122 = math.exp %121 : vector<16x64xf32>
    %c2 = arith.constant 2 : index
    %c0_39 = arith.constant 0 : index
    %c0_40 = arith.constant 0 : index
    %123 = vector.load %arg7[%c2, %c0_39, %c0_40] : memref<8x16x64xf32, #tpu.memory_space<vmem>>, vector<1x16x64xf32>
    %124 = vector.shape_cast %123 : vector<1x16x64xf32> to vector<16x64xf32>
    %125 = vector.shape_cast %122 : vector<16x64xf32> to vector<1x16x64xf32>
    tpu.vector_store %arg7[%c2, %c0_39, %c0_40], %125 {strides = array<i32>} : memref<8x16x64xf32, #tpu.memory_space<vmem>>, vector<1x16x64xf32>,
    %126 = vector.extract_strided_slice %70 {offsets = [0, 2], sizes = [16, 1], strides = [1, 1]} : vector<16x8xf32> to vector<16x1xf32>
    %127 = vector.extract_strided_slice %73 {offsets = [2, 0], sizes = [1, 64], strides = [1, 1]} : vector<8x64xf32> to vector<1x64xf32>
    %128 = vector.broadcast %126 : vector<16x1xf32> to vector<16x64xf32>
    %129 = vector.broadcast %127 : vector<1x64xf32> to vector<16x64xf32>
    %130 = arith.mulf %128, %129 : vector<16x64xf32>
    %c2_41 = arith.constant 2 : index
    %c0_42 = arith.constant 0 : index
    %c0_43 = arith.constant 0 : index
    %131 = vector.load %arg8[%c2_41, %c0_42, %c0_43] : memref<8x16x64xf32, #tpu.memory_space<vmem>>, vector<1x16x64xf32>
    %132 = vector.shape_cast %131 : vector<1x16x64xf32> to vector<16x64xf32>
    %133 = vector.shape_cast %130 : vector<16x64xf32> to vector<1x16x64xf32>
    tpu.vector_store %arg8[%c2_41, %c0_42, %c0_43], %133 {strides = array<i32>} : memref<8x16x64xf32, #tpu.memory_space<vmem>>, vector<1x16x64xf32>,
    %134 = vector.extract_strided_slice %72 {offsets = [0, 2], sizes = [16, 1], strides = [1, 1]} : vector<16x8xf32> to vector<16x1xf32>
    %135 = vector.shape_cast %134 : vector<16x1xf32> to vector<16x1xf32>
    %136 = vector.broadcast %135 : vector<16x1xf32> to vector<16x64xf32>
    %c2_44 = arith.constant 2 : index
    %c0_45 = arith.constant 0 : index
    %c0_46 = arith.constant 0 : index
    %137 = vector.load %arg9[%c2_44, %c0_45, %c0_46] : memref<8x16x64xf32, #tpu.memory_space<vmem>>, vector<1x16x64xf32>
    %138 = vector.shape_cast %137 : vector<1x16x64xf32> to vector<16x64xf32>
    %139 = vector.shape_cast %136 : vector<16x64xf32> to vector<1x16x64xf32>
    tpu.vector_store %arg9[%c2_44, %c0_45, %c0_46], %139 {strides = array<i32>} : memref<8x16x64xf32, #tpu.memory_space<vmem>>, vector<1x16x64xf32>,
    %140 = vector.extract_strided_slice %68 {offsets = [3, 0], sizes = [1, 64], strides = [1, 1]} : vector<8x64xf32> to vector<1x64xf32>
    %141 = vector.broadcast %140 : vector<1x64xf32> to vector<16x64xf32>
    %142 = arith.mulf %76, %141 : vector<16x64xf32>
    %143 = math.exp %142 : vector<16x64xf32>
    %c3 = arith.constant 3 : index
    %c0_47 = arith.constant 0 : index
    %c0_48 = arith.constant 0 : index
    %144 = vector.load %arg7[%c3, %c0_47, %c0_48] : memref<8x16x64xf32, #tpu.memory_space<vmem>>, vector<1x16x64xf32>
    %145 = vector.shape_cast %144 : vector<1x16x64xf32> to vector<16x64xf32>
    %146 = vector.shape_cast %143 : vector<16x64xf32> to vector<1x16x64xf32>
    tpu.vector_store %arg7[%c3, %c0_47, %c0_48], %146 {strides = array<i32>} : memref<8x16x64xf32, #tpu.memory_space<vmem>>, vector<1x16x64xf32>,
    %147 = vector.extract_strided_slice %70 {offsets = [0, 3], sizes = [16, 1], strides = [1, 1]} : vector<16x8xf32> to vector<16x1xf32>
    %148 = vector.extract_strided_slice %73 {offsets = [3, 0], sizes = [1, 64], strides = [1, 1]} : vector<8x64xf32> to vector<1x64xf32>
    %149 = vector.broadcast %147 : vector<16x1xf32> to vector<16x64xf32>
    %150 = vector.broadcast %148 : vector<1x64xf32> to vector<16x64xf32>
    %151 = arith.mulf %149, %150 : vector<16x64xf32>
    %c3_49 = arith.constant 3 : index
    %c0_50 = arith.constant 0 : index
    %c0_51 = arith.constant 0 : index
    %152 = vector.load %arg8[%c3_49, %c0_50, %c0_51] : memref<8x16x64xf32, #tpu.memory_space<vmem>>, vector<1x16x64xf32>
    %153 = vector.shape_cast %152 : vector<1x16x64xf32> to vector<16x64xf32>
    %154 = vector.shape_cast %151 : vector<16x64xf32> to vector<1x16x64xf32>
    tpu.vector_store %arg8[%c3_49, %c0_50, %c0_51], %154 {strides = array<i32>} : memref<8x16x64xf32, #tpu.memory_space<vmem>>, vector<1x16x64xf32>,
    %155 = vector.extract_strided_slice %72 {offsets = [0, 3], sizes = [16, 1], strides = [1, 1]} : vector<16x8xf32> to vector<16x1xf32>
    %156 = vector.shape_cast %155 : vector<16x1xf32> to vector<16x1xf32>
    %157 = vector.broadcast %156 : vector<16x1xf32> to vector<16x64xf32>
    %c3_52 = arith.constant 3 : index
    %c0_53 = arith.constant 0 : index
    %c0_54 = arith.constant 0 : index
    %158 = vector.load %arg9[%c3_52, %c0_53, %c0_54] : memref<8x16x64xf32, #tpu.memory_space<vmem>>, vector<1x16x64xf32>
    %159 = vector.shape_cast %158 : vector<1x16x64xf32> to vector<16x64xf32>
    %160 = vector.shape_cast %157 : vector<16x64xf32> to vector<1x16x64xf32>
    tpu.vector_store %arg9[%c3_52, %c0_53, %c0_54], %160 {strides = array<i32>} : memref<8x16x64xf32, #tpu.memory_space<vmem>>, vector<1x16x64xf32>,
    %161 = vector.extract_strided_slice %68 {offsets = [4, 0], sizes = [1, 64], strides = [1, 1]} : vector<8x64xf32> to vector<1x64xf32>
    %162 = vector.broadcast %161 : vector<1x64xf32> to vector<16x64xf32>
    %163 = arith.mulf %76, %162 : vector<16x64xf32>
    %164 = math.exp %163 : vector<16x64xf32>
    %c4_55 = arith.constant 4 : index
    %c0_56 = arith.constant 0 : index
    %c0_57 = arith.constant 0 : index
    %165 = vector.load %arg7[%c4_55, %c0_56, %c0_57] : memref<8x16x64xf32, #tpu.memory_space<vmem>>, vector<1x16x64xf32>
    %166 = vector.shape_cast %165 : vector<1x16x64xf32> to vector<16x64xf32>
    %167 = vector.shape_cast %164 : vector<16x64xf32> to vector<1x16x64xf32>
    tpu.vector_store %arg7[%c4_55, %c0_56, %c0_57], %167 {strides = array<i32>} : memref<8x16x64xf32, #tpu.memory_space<vmem>>, vector<1x16x64xf32>,
    %168 = vector.extract_strided_slice %70 {offsets = [0, 4], sizes = [16, 1], strides = [1, 1]} : vector<16x8xf32> to vector<16x1xf32>
    %169 = vector.extract_strided_slice %73 {offsets = [4, 0], sizes = [1, 64], strides = [1, 1]} : vector<8x64xf32> to vector<1x64xf32>
    %170 = vector.broadcast %168 : vector<16x1xf32> to vector<16x64xf32>
    %171 = vector.broadcast %169 : vector<1x64xf32> to vector<16x64xf32>
    %172 = arith.mulf %170, %171 : vector<16x64xf32>
    %c4_58 = arith.constant 4 : index
    %c0_59 = arith.constant 0 : index
    %c0_60 = arith.constant 0 : index
    %173 = vector.load %arg8[%c4_58, %c0_59, %c0_60] : memref<8x16x64xf32, #tpu.memory_space<vmem>>, vector<1x16x64xf32>
    %174 = vector.shape_cast %173 : vector<1x16x64xf32> to vector<16x64xf32>
    %175 = vector.shape_cast %172 : vector<16x64xf32> to vector<1x16x64xf32>
    tpu.vector_store %arg8[%c4_58, %c0_59, %c0_60], %175 {strides = array<i32>} : memref<8x16x64xf32, #tpu.memory_space<vmem>>, vector<1x16x64xf32>,
    %176 = vector.extract_strided_slice %72 {offsets = [0, 4], sizes = [16, 1], strides = [1, 1]} : vector<16x8xf32> to vector<16x1xf32>
    %177 = vector.shape_cast %176 : vector<16x1xf32> to vector<16x1xf32>
    %178 = vector.broadcast %177 : vector<16x1xf32> to vector<16x64xf32>
    %c4_61 = arith.constant 4 : index
    %c0_62 = arith.constant 0 : index
    %c0_63 = arith.constant 0 : index
    %179 = vector.load %arg9[%c4_61, %c0_62, %c0_63] : memref<8x16x64xf32, #tpu.memory_space<vmem>>, vector<1x16x64xf32>
    %180 = vector.shape_cast %179 : vector<1x16x64xf32> to vector<16x64xf32>
    %181 = vector.shape_cast %178 : vector<16x64xf32> to vector<1x16x64xf32>
    tpu.vector_store %arg9[%c4_61, %c0_62, %c0_63], %181 {strides = array<i32>} : memref<8x16x64xf32, #tpu.memory_space<vmem>>, vector<1x16x64xf32>,
    %182 = vector.extract_strided_slice %68 {offsets = [5, 0], sizes = [1, 64], strides = [1, 1]} : vector<8x64xf32> to vector<1x64xf32>
    %183 = vector.broadcast %182 : vector<1x64xf32> to vector<16x64xf32>
    %184 = arith.mulf %76, %183 : vector<16x64xf32>
    %185 = math.exp %184 : vector<16x64xf32>
    %c5_64 = arith.constant 5 : index
    %c0_65 = arith.constant 0 : index
    %c0_66 = arith.constant 0 : index
    %186 = vector.load %arg7[%c5_64, %c0_65, %c0_66] : memref<8x16x64xf32, #tpu.memory_space<vmem>>, vector<1x16x64xf32>
    %187 = vector.shape_cast %186 : vector<1x16x64xf32> to vector<16x64xf32>
    %188 = vector.shape_cast %185 : vector<16x64xf32> to vector<1x16x64xf32>
    tpu.vector_store %arg7[%c5_64, %c0_65, %c0_66], %188 {strides = array<i32>} : memref<8x16x64xf32, #tpu.memory_space<vmem>>, vector<1x16x64xf32>,
    %189 = vector.extract_strided_slice %70 {offsets = [0, 5], sizes = [16, 1], strides = [1, 1]} : vector<16x8xf32> to vector<16x1xf32>
    %190 = vector.extract_strided_slice %73 {offsets = [5, 0], sizes = [1, 64], strides = [1, 1]} : vector<8x64xf32> to vector<1x64xf32>
    %191 = vector.broadcast %189 : vector<16x1xf32> to vector<16x64xf32>
    %192 = vector.broadcast %190 : vector<1x64xf32> to vector<16x64xf32>
    %193 = arith.mulf %191, %192 : vector<16x64xf32>
    %c5_67 = arith.constant 5 : index
    %c0_68 = arith.constant 0 : index
    %c0_69 = arith.constant 0 : index
    %194 = vector.load %arg8[%c5_67, %c0_68, %c0_69] : memref<8x16x64xf32, #tpu.memory_space<vmem>>, vector<1x16x64xf32>
    %195 = vector.shape_cast %194 : vector<1x16x64xf32> to vector<16x64xf32>
    %196 = vector.shape_cast %193 : vector<16x64xf32> to vector<1x16x64xf32>
    tpu.vector_store %arg8[%c5_67, %c0_68, %c0_69], %196 {strides = array<i32>} : memref<8x16x64xf32, #tpu.memory_space<vmem>>, vector<1x16x64xf32>,
    %197 = vector.extract_strided_slice %72 {offsets = [0, 5], sizes = [16, 1], strides = [1, 1]} : vector<16x8xf32> to vector<16x1xf32>
    %198 = vector.shape_cast %197 : vector<16x1xf32> to vector<16x1xf32>
    %199 = vector.broadcast %198 : vector<16x1xf32> to vector<16x64xf32>
    %c5_70 = arith.constant 5 : index
    %c0_71 = arith.constant 0 : index
    %c0_72 = arith.constant 0 : index
    %200 = vector.load %arg9[%c5_70, %c0_71, %c0_72] : memref<8x16x64xf32, #tpu.memory_space<vmem>>, vector<1x16x64xf32>
    %201 = vector.shape_cast %200 : vector<1x16x64xf32> to vector<16x64xf32>
    %202 = vector.shape_cast %199 : vector<16x64xf32> to vector<1x16x64xf32>
    tpu.vector_store %arg9[%c5_70, %c0_71, %c0_72], %202 {strides = array<i32>} : memref<8x16x64xf32, #tpu.memory_space<vmem>>, vector<1x16x64xf32>,
    %203 = vector.extract_strided_slice %68 {offsets = [6, 0], sizes = [1, 64], strides = [1, 1]} : vector<8x64xf32> to vector<1x64xf32>
    %204 = vector.broadcast %203 : vector<1x64xf32> to vector<16x64xf32>
    %205 = arith.mulf %76, %204 : vector<16x64xf32>
    %206 = math.exp %205 : vector<16x64xf32>
    %c6_73 = arith.constant 6 : index
    %c0_74 = arith.constant 0 : index
    %c0_75 = arith.constant 0 : index
    %207 = vector.load %arg7[%c6_73, %c0_74, %c0_75] : memref<8x16x64xf32, #tpu.memory_space<vmem>>, vector<1x16x64xf32>
    %208 = vector.shape_cast %207 : vector<1x16x64xf32> to vector<16x64xf32>
    %209 = vector.shape_cast %206 : vector<16x64xf32> to vector<1x16x64xf32>
    tpu.vector_store %arg7[%c6_73, %c0_74, %c0_75], %209 {strides = array<i32>} : memref<8x16x64xf32, #tpu.memory_space<vmem>>, vector<1x16x64xf32>,
    %210 = vector.extract_strided_slice %70 {offsets = [0, 6], sizes = [16, 1], strides = [1, 1]} : vector<16x8xf32> to vector<16x1xf32>
    %211 = vector.extract_strided_slice %73 {offsets = [6, 0], sizes = [1, 64], strides = [1, 1]} : vector<8x64xf32> to vector<1x64xf32>
    %212 = vector.broadcast %210 : vector<16x1xf32> to vector<16x64xf32>
    %213 = vector.broadcast %211 : vector<1x64xf32> to vector<16x64xf32>
    %214 = arith.mulf %212, %213 : vector<16x64xf32>
    %c6_76 = arith.constant 6 : index
    %c0_77 = arith.constant 0 : index
    %c0_78 = arith.constant 0 : index
    %215 = vector.load %arg8[%c6_76, %c0_77, %c0_78] : memref<8x16x64xf32, #tpu.memory_space<vmem>>, vector<1x16x64xf32>
    %216 = vector.shape_cast %215 : vector<1x16x64xf32> to vector<16x64xf32>
    %217 = vector.shape_cast %214 : vector<16x64xf32> to vector<1x16x64xf32>
    tpu.vector_store %arg8[%c6_76, %c0_77, %c0_78], %217 {strides = array<i32>} : memref<8x16x64xf32, #tpu.memory_space<vmem>>, vector<1x16x64xf32>,
    %218 = vector.extract_strided_slice %72 {offsets = [0, 6], sizes = [16, 1], strides = [1, 1]} : vector<16x8xf32> to vector<16x1xf32>
    %219 = vector.shape_cast %218 : vector<16x1xf32> to vector<16x1xf32>
    %220 = vector.broadcast %219 : vector<16x1xf32> to vector<16x64xf32>
    %c6_79 = arith.constant 6 : index
    %c0_80 = arith.constant 0 : index
    %c0_81 = arith.constant 0 : index
    %221 = vector.load %arg9[%c6_79, %c0_80, %c0_81] : memref<8x16x64xf32, #tpu.memory_space<vmem>>, vector<1x16x64xf32>
    %222 = vector.shape_cast %221 : vector<1x16x64xf32> to vector<16x64xf32>
    %223 = vector.shape_cast %220 : vector<16x64xf32> to vector<1x16x64xf32>
    tpu.vector_store %arg9[%c6_79, %c0_80, %c0_81], %223 {strides = array<i32>} : memref<8x16x64xf32, #tpu.memory_space<vmem>>, vector<1x16x64xf32>,
    %224 = vector.extract_strided_slice %68 {offsets = [7, 0], sizes = [1, 64], strides = [1, 1]} : vector<8x64xf32> to vector<1x64xf32>
    %225 = vector.broadcast %224 : vector<1x64xf32> to vector<16x64xf32>
    %226 = arith.mulf %76, %225 : vector<16x64xf32>
    %227 = math.exp %226 : vector<16x64xf32>
    %c7 = arith.constant 7 : index
    %c0_82 = arith.constant 0 : index
    %c0_83 = arith.constant 0 : index
    %228 = vector.load %arg7[%c7, %c0_82, %c0_83] : memref<8x16x64xf32, #tpu.memory_space<vmem>>, vector<1x16x64xf32>
    %229 = vector.shape_cast %228 : vector<1x16x64xf32> to vector<16x64xf32>
    %230 = vector.shape_cast %227 : vector<16x64xf32> to vector<1x16x64xf32>
    tpu.vector_store %arg7[%c7, %c0_82, %c0_83], %230 {strides = array<i32>} : memref<8x16x64xf32, #tpu.memory_space<vmem>>, vector<1x16x64xf32>,
    %231 = vector.extract_strided_slice %70 {offsets = [0, 7], sizes = [16, 1], strides = [1, 1]} : vector<16x8xf32> to vector<16x1xf32>
    %232 = vector.extract_strided_slice %73 {offsets = [7, 0], sizes = [1, 64], strides = [1, 1]} : vector<8x64xf32> to vector<1x64xf32>
    %233 = vector.broadcast %231 : vector<16x1xf32> to vector<16x64xf32>
    %234 = vector.broadcast %232 : vector<1x64xf32> to vector<16x64xf32>
    %235 = arith.mulf %233, %234 : vector<16x64xf32>
    %c7_84 = arith.constant 7 : index
    %c0_85 = arith.constant 0 : index
    %c0_86 = arith.constant 0 : index
    %236 = vector.load %arg8[%c7_84, %c0_85, %c0_86] : memref<8x16x64xf32, #tpu.memory_space<vmem>>, vector<1x16x64xf32>
    %237 = vector.shape_cast %236 : vector<1x16x64xf32> to vector<16x64xf32>
    %238 = vector.shape_cast %235 : vector<16x64xf32> to vector<1x16x64xf32>
    tpu.vector_store %arg8[%c7_84, %c0_85, %c0_86], %238 {strides = array<i32>} : memref<8x16x64xf32, #tpu.memory_space<vmem>>, vector<1x16x64xf32>,
    %239 = vector.extract_strided_slice %72 {offsets = [0, 7], sizes = [16, 1], strides = [1, 1]} : vector<16x8xf32> to vector<16x1xf32>
    %240 = vector.shape_cast %239 : vector<16x1xf32> to vector<16x1xf32>
    %241 = vector.broadcast %240 : vector<16x1xf32> to vector<16x64xf32>
    %c7_87 = arith.constant 7 : index
    %c0_88 = arith.constant 0 : index
    %c0_89 = arith.constant 0 : index
    %242 = vector.load %arg9[%c7_87, %c0_88, %c0_89] : memref<8x16x64xf32, #tpu.memory_space<vmem>>, vector<1x16x64xf32>
    %243 = vector.shape_cast %242 : vector<1x16x64xf32> to vector<16x64xf32>
    %244 = vector.shape_cast %241 : vector<16x64xf32> to vector<1x16x64xf32>
    tpu.vector_store %arg9[%c7_87, %c0_88, %c0_89], %244 {strides = array<i32>} : memref<8x16x64xf32, #tpu.memory_space<vmem>>, vector<1x16x64xf32>,
    %cst_90 = arith.constant 0.000000e+00 : f32
    %245 = vector.broadcast %cst_90 : f32 to vector<16x64xf32>
    %c0_i32 = arith.constant 0 : i32
    %246 = arith.index_cast %c0_i32 : i32 to index
    %c0_91 = arith.constant 0 : index
    %c0_92 = arith.constant 0 : index
    %247 = vector.load %arg7[%246, %c0_91, %c0_92] : memref<8x16x64xf32, #tpu.memory_space<vmem>>, vector<1x16x64xf32>
    %248 = vector.shape_cast %247 : vector<1x16x64xf32> to vector<16x64xf32>
    %249 = arith.mulf %248, %245 : vector<16x64xf32>
    %250 = arith.index_cast %c0_i32 : i32 to index
    %c0_93 = arith.constant 0 : index
    %c0_94 = arith.constant 0 : index
    %251 = vector.load %arg8[%250, %c0_93, %c0_94] : memref<8x16x64xf32, #tpu.memory_space<vmem>>, vector<1x16x64xf32>
    %252 = vector.shape_cast %251 : vector<1x16x64xf32> to vector<16x64xf32>
    %253 = arith.addf %249, %252 : vector<16x64xf32>
    %254 = arith.index_cast %c0_i32 : i32 to index
    %c0_95 = arith.constant 0 : index
    %c0_96 = arith.constant 0 : index
    %255 = vector.load %arg9[%254, %c0_95, %c0_96] : memref<8x16x64xf32, #tpu.memory_space<vmem>>, vector<1x16x64xf32>
    %256 = vector.shape_cast %255 : vector<1x16x64xf32> to vector<16x64xf32>
    %257 = arith.mulf %253, %256 : vector<16x64xf32>
    %cst_97 = arith.constant dense<0.000000e+00> : vector<64xf32>
    %258 = vector.multi_reduction <add>, %257, %cst_97 [0] : vector<16x64xf32> to vector<64xf32>
    %259 = vector.shape_cast %258 : vector<64xf32> to vector<1x64xf32>
    %260 = arith.index_cast %c0_i32 : i32 to index
    %c0_98 = arith.constant 0 : index
    %261 = vector.load %arg10[%260, %c0_98] : memref<8x64xf32, #tpu.memory_space<vmem>>, vector<1x64xf32>
    tpu.vector_store %arg10[%260, %c0_98], %259 {strides = array<i32>} : memref<8x64xf32, #tpu.memory_space<vmem>>, vector<1x64xf32>,
    %c1_i32_99 = arith.constant 1 : i32
    %262 = arith.index_cast %c1_i32_99 : i32 to index
    %c0_100 = arith.constant 0 : index
    %c0_101 = arith.constant 0 : index
    %263 = vector.load %arg7[%262, %c0_100, %c0_101] : memref<8x16x64xf32, #tpu.memory_space<vmem>>, vector<1x16x64xf32>
    %264 = vector.shape_cast %263 : vector<1x16x64xf32> to vector<16x64xf32>
    %265 = arith.mulf %264, %253 : vector<16x64xf32>
    %266 = arith.index_cast %c1_i32_99 : i32 to index
    %c0_102 = arith.constant 0 : index
    %c0_103 = arith.constant 0 : index
    %267 = vector.load %arg8[%266, %c0_102, %c0_103] : memref<8x16x64xf32, #tpu.memory_space<vmem>>, vector<1x16x64xf32>
    %268 = vector.shape_cast %267 : vector<1x16x64xf32> to vector<16x64xf32>
    %269 = arith.addf %265, %268 : vector<16x64xf32>
    %270 = arith.index_cast %c1_i32_99 : i32 to index
    %c0_104 = arith.constant 0 : index
    %c0_105 = arith.constant 0 : index
    %271 = vector.load %arg9[%270, %c0_104, %c0_105] : memref<8x16x64xf32, #tpu.memory_space<vmem>>, vector<1x16x64xf32>
    %272 = vector.shape_cast %271 : vector<1x16x64xf32> to vector<16x64xf32>
    %273 = arith.mulf %269, %272 : vector<16x64xf32>
    %cst_106 = arith.constant dense<0.000000e+00> : vector<64xf32>
    %274 = vector.multi_reduction <add>, %273, %cst_106 [0] : vector<16x64xf32> to vector<64xf32>
    %275 = vector.shape_cast %274 : vector<64xf32> to vector<1x64xf32>
    %276 = arith.index_cast %c1_i32_99 : i32 to index
    %c0_107 = arith.constant 0 : index
    %277 = vector.load %arg10[%276, %c0_107] : memref<8x64xf32, #tpu.memory_space<vmem>>, vector<1x64xf32>
    tpu.vector_store %arg10[%276, %c0_107], %275 {strides = array<i32>} : memref<8x64xf32, #tpu.memory_space<vmem>>, vector<1x64xf32>,
    %c2_i32_108 = arith.constant 2 : i32
    %278 = arith.index_cast %c2_i32_108 : i32 to index
    %c0_109 = arith.constant 0 : index
    %c0_110 = arith.constant 0 : index
    %279 = vector.load %arg7[%278, %c0_109, %c0_110] : memref<8x16x64xf32, #tpu.memory_space<vmem>>, vector<1x16x64xf32>
    %280 = vector.shape_cast %279 : vector<1x16x64xf32> to vector<16x64xf32>
    %281 = arith.mulf %280, %269 : vector<16x64xf32>
    %282 = arith.index_cast %c2_i32_108 : i32 to index
    %c0_111 = arith.constant 0 : index
    %c0_112 = arith.constant 0 : index
    %283 = vector.load %arg8[%282, %c0_111, %c0_112] : memref<8x16x64xf32, #tpu.memory_space<vmem>>, vector<1x16x64xf32>
    %284 = vector.shape_cast %283 : vector<1x16x64xf32> to vector<16x64xf32>
    %285 = arith.addf %281, %284 : vector<16x64xf32>
    %286 = arith.index_cast %c2_i32_108 : i32 to index
    %c0_113 = arith.constant 0 : index
    %c0_114 = arith.constant 0 : index
    %287 = vector.load %arg9[%286, %c0_113, %c0_114] : memref<8x16x64xf32, #tpu.memory_space<vmem>>, vector<1x16x64xf32>
    %288 = vector.shape_cast %287 : vector<1x16x64xf32> to vector<16x64xf32>
    %289 = arith.mulf %285, %288 : vector<16x64xf32>
    %cst_115 = arith.constant dense<0.000000e+00> : vector<64xf32>
    %290 = vector.multi_reduction <add>, %289, %cst_115 [0] : vector<16x64xf32> to vector<64xf32>
    %291 = vector.shape_cast %290 : vector<64xf32> to vector<1x64xf32>
    %292 = arith.index_cast %c2_i32_108 : i32 to index
    %c0_116 = arith.constant 0 : index
    %293 = vector.load %arg10[%292, %c0_116] : memref<8x64xf32, #tpu.memory_space<vmem>>, vector<1x64xf32>
    tpu.vector_store %arg10[%292, %c0_116], %291 {strides = array<i32>} : memref<8x64xf32, #tpu.memory_space<vmem>>, vector<1x64xf32>,
    %c3_i32_117 = arith.constant 3 : i32
    %294 = arith.index_cast %c3_i32_117 : i32 to index
    %c0_118 = arith.constant 0 : index
    %c0_119 = arith.constant 0 : index
    %295 = vector.load %arg7[%294, %c0_118, %c0_119] : memref<8x16x64xf32, #tpu.memory_space<vmem>>, vector<1x16x64xf32>
    %296 = vector.shape_cast %295 : vector<1x16x64xf32> to vector<16x64xf32>
    %297 = arith.mulf %296, %285 : vector<16x64xf32>
    %298 = arith.index_cast %c3_i32_117 : i32 to index
    %c0_120 = arith.constant 0 : index
    %c0_121 = arith.constant 0 : index
    %299 = vector.load %arg8[%298, %c0_120, %c0_121] : memref<8x16x64xf32, #tpu.memory_space<vmem>>, vector<1x16x64xf32>
    %300 = vector.shape_cast %299 : vector<1x16x64xf32> to vector<16x64xf32>
    %301 = arith.addf %297, %300 : vector<16x64xf32>
    %302 = arith.index_cast %c3_i32_117 : i32 to index
    %c0_122 = arith.constant 0 : index
    %c0_123 = arith.constant 0 : index
    %303 = vector.load %arg9[%302, %c0_122, %c0_123] : memref<8x16x64xf32, #tpu.memory_space<vmem>>, vector<1x16x64xf32>
    %304 = vector.shape_cast %303 : vector<1x16x64xf32> to vector<16x64xf32>
    %305 = arith.mulf %301, %304 : vector<16x64xf32>
    %cst_124 = arith.constant dense<0.000000e+00> : vector<64xf32>
    %306 = vector.multi_reduction <add>, %305, %cst_124 [0] : vector<16x64xf32> to vector<64xf32>
    %307 = vector.shape_cast %306 : vector<64xf32> to vector<1x64xf32>
    %308 = arith.index_cast %c3_i32_117 : i32 to index
    %c0_125 = arith.constant 0 : index
    %309 = vector.load %arg10[%308, %c0_125] : memref<8x64xf32, #tpu.memory_space<vmem>>, vector<1x64xf32>
    tpu.vector_store %arg10[%308, %c0_125], %307 {strides = array<i32>} : memref<8x64xf32, #tpu.memory_space<vmem>>, vector<1x64xf32>,
    %c4_i32 = arith.constant 4 : i32
    %310 = arith.index_cast %c4_i32 : i32 to index
    %c0_126 = arith.constant 0 : index
    %c0_127 = arith.constant 0 : index
    %311 = vector.load %arg7[%310, %c0_126, %c0_127] : memref<8x16x64xf32, #tpu.memory_space<vmem>>, vector<1x16x64xf32>
    %312 = vector.shape_cast %311 : vector<1x16x64xf32> to vector<16x64xf32>
    %313 = arith.mulf %312, %301 : vector<16x64xf32>
    %314 = arith.index_cast %c4_i32 : i32 to index
    %c0_128 = arith.constant 0 : index
    %c0_129 = arith.constant 0 : index
    %315 = vector.load %arg8[%314, %c0_128, %c0_129] : memref<8x16x64xf32, #tpu.memory_space<vmem>>, vector<1x16x64xf32>
    %316 = vector.shape_cast %315 : vector<1x16x64xf32> to vector<16x64xf32>
    %317 = arith.addf %313, %316 : vector<16x64xf32>
    %318 = arith.index_cast %c4_i32 : i32 to index
    %c0_130 = arith.constant 0 : index
    %c0_131 = arith.constant 0 : index
    %319 = vector.load %arg9[%318, %c0_130, %c0_131] : memref<8x16x64xf32, #tpu.memory_space<vmem>>, vector<1x16x64xf32>
    %320 = vector.shape_cast %319 : vector<1x16x64xf32> to vector<16x64xf32>
    %321 = arith.mulf %317, %320 : vector<16x64xf32>
    %cst_132 = arith.constant dense<0.000000e+00> : vector<64xf32>
    %322 = vector.multi_reduction <add>, %321, %cst_132 [0] : vector<16x64xf32> to vector<64xf32>
    %323 = vector.shape_cast %322 : vector<64xf32> to vector<1x64xf32>
    %324 = arith.index_cast %c4_i32 : i32 to index
    %c0_133 = arith.constant 0 : index
    %325 = vector.load %arg10[%324, %c0_133] : memref<8x64xf32, #tpu.memory_space<vmem>>, vector<1x64xf32>
    tpu.vector_store %arg10[%324, %c0_133], %323 {strides = array<i32>} : memref<8x64xf32, #tpu.memory_space<vmem>>, vector<1x64xf32>,
    %c5_i32 = arith.constant 5 : i32
    %326 = arith.index_cast %c5_i32 : i32 to index
    %c0_134 = arith.constant 0 : index
    %c0_135 = arith.constant 0 : index
    %327 = vector.load %arg7[%326, %c0_134, %c0_135] : memref<8x16x64xf32, #tpu.memory_space<vmem>>, vector<1x16x64xf32>
    %328 = vector.shape_cast %327 : vector<1x16x64xf32> to vector<16x64xf32>
    %329 = arith.mulf %328, %317 : vector<16x64xf32>
    %330 = arith.index_cast %c5_i32 : i32 to index
    %c0_136 = arith.constant 0 : index
    %c0_137 = arith.constant 0 : index
    %331 = vector.load %arg8[%330, %c0_136, %c0_137] : memref<8x16x64xf32, #tpu.memory_space<vmem>>, vector<1x16x64xf32>
    %332 = vector.shape_cast %331 : vector<1x16x64xf32> to vector<16x64xf32>
    %333 = arith.addf %329, %332 : vector<16x64xf32>
    %334 = arith.index_cast %c5_i32 : i32 to index
    %c0_138 = arith.constant 0 : index
    %c0_139 = arith.constant 0 : index
    %335 = vector.load %arg9[%334, %c0_138, %c0_139] : memref<8x16x64xf32, #tpu.memory_space<vmem>>, vector<1x16x64xf32>
    %336 = vector.shape_cast %335 : vector<1x16x64xf32> to vector<16x64xf32>
    %337 = arith.mulf %333, %336 : vector<16x64xf32>
    %cst_140 = arith.constant dense<0.000000e+00> : vector<64xf32>
    %338 = vector.multi_reduction <add>, %337, %cst_140 [0] : vector<16x64xf32> to vector<64xf32>
    %339 = vector.shape_cast %338 : vector<64xf32> to vector<1x64xf32>
    %340 = arith.index_cast %c5_i32 : i32 to index
    %c0_141 = arith.constant 0 : index
    %341 = vector.load %arg10[%340, %c0_141] : memref<8x64xf32, #tpu.memory_space<vmem>>, vector<1x64xf32>
    tpu.vector_store %arg10[%340, %c0_141], %339 {strides = array<i32>} : memref<8x64xf32, #tpu.memory_space<vmem>>, vector<1x64xf32>,
    %c6_i32 = arith.constant 6 : i32
    %342 = arith.index_cast %c6_i32 : i32 to index
    %c0_142 = arith.constant 0 : index
    %c0_143 = arith.constant 0 : index
    %343 = vector.load %arg7[%342, %c0_142, %c0_143] : memref<8x16x64xf32, #tpu.memory_space<vmem>>, vector<1x16x64xf32>
    %344 = vector.shape_cast %343 : vector<1x16x64xf32> to vector<16x64xf32>
    %345 = arith.mulf %344, %333 : vector<16x64xf32>
    %346 = arith.index_cast %c6_i32 : i32 to index
    %c0_144 = arith.constant 0 : index
    %c0_145 = arith.constant 0 : index
    %347 = vector.load %arg8[%346, %c0_144, %c0_145] : memref<8x16x64xf32, #tpu.memory_space<vmem>>, vector<1x16x64xf32>
    %348 = vector.shape_cast %347 : vector<1x16x64xf32> to vector<16x64xf32>
    %349 = arith.addf %345, %348 : vector<16x64xf32>
    %350 = arith.index_cast %c6_i32 : i32 to index
    %c0_146 = arith.constant 0 : index
    %c0_147 = arith.constant 0 : index
    %351 = vector.load %arg9[%350, %c0_146, %c0_147] : memref<8x16x64xf32, #tpu.memory_space<vmem>>, vector<1x16x64xf32>
    %352 = vector.shape_cast %351 : vector<1x16x64xf32> to vector<16x64xf32>
    %353 = arith.mulf %349, %352 : vector<16x64xf32>
    %cst_148 = arith.constant dense<0.000000e+00> : vector<64xf32>
    %354 = vector.multi_reduction <add>, %353, %cst_148 [0] : vector<16x64xf32> to vector<64xf32>
    %355 = vector.shape_cast %354 : vector<64xf32> to vector<1x64xf32>
    %356 = arith.index_cast %c6_i32 : i32 to index
    %c0_149 = arith.constant 0 : index
    %357 = vector.load %arg10[%356, %c0_149] : memref<8x64xf32, #tpu.memory_space<vmem>>, vector<1x64xf32>
    tpu.vector_store %arg10[%356, %c0_149], %355 {strides = array<i32>} : memref<8x64xf32, #tpu.memory_space<vmem>>, vector<1x64xf32>,
    %c7_i32 = arith.constant 7 : i32
    %358 = arith.index_cast %c7_i32 : i32 to index
    %c0_150 = arith.constant 0 : index
    %c0_151 = arith.constant 0 : index
    %359 = vector.load %arg7[%358, %c0_150, %c0_151] : memref<8x16x64xf32, #tpu.memory_space<vmem>>, vector<1x16x64xf32>
    %360 = vector.shape_cast %359 : vector<1x16x64xf32> to vector<16x64xf32>
    %361 = arith.mulf %360, %349 : vector<16x64xf32>
    %362 = arith.index_cast %c7_i32 : i32 to index
    %c0_152 = arith.constant 0 : index
    %c0_153 = arith.constant 0 : index
    %363 = vector.load %arg8[%362, %c0_152, %c0_153] : memref<8x16x64xf32, #tpu.memory_space<vmem>>, vector<1x16x64xf32>
    %364 = vector.shape_cast %363 : vector<1x16x64xf32> to vector<16x64xf32>
    %365 = arith.addf %361, %364 : vector<16x64xf32>
    %366 = arith.index_cast %c7_i32 : i32 to index
    %c0_154 = arith.constant 0 : index
    %c0_155 = arith.constant 0 : index
    %367 = vector.load %arg9[%366, %c0_154, %c0_155] : memref<8x16x64xf32, #tpu.memory_space<vmem>>, vector<1x16x64xf32>
    %368 = vector.shape_cast %367 : vector<1x16x64xf32> to vector<16x64xf32>
    %369 = arith.mulf %365, %368 : vector<16x64xf32>
    %cst_156 = arith.constant dense<0.000000e+00> : vector<64xf32>
    %370 = vector.multi_reduction <add>, %369, %cst_156 [0] : vector<16x64xf32> to vector<64xf32>
    %371 = vector.shape_cast %370 : vector<64xf32> to vector<1x64xf32>
    %372 = arith.index_cast %c7_i32 : i32 to index
    %c0_157 = arith.constant 0 : index
    %373 = vector.load %arg10[%372, %c0_157] : memref<8x64xf32, #tpu.memory_space<vmem>>, vector<1x64xf32>
    tpu.vector_store %arg10[%372, %c0_157], %371 {strides = array<i32>} : memref<8x64xf32, #tpu.memory_space<vmem>>, vector<1x64xf32>,
    %c8_i32 = arith.constant 8 : i32
    %c0_158 = arith.constant 0 : index
    %c0_159 = arith.constant 0 : index
    %374 = vector.load %arg10[%c0_158, %c0_159] : memref<8x64xf32, #tpu.memory_space<vmem>>, vector<8x64xf32>
    %375 = vector.broadcast %8 : vector<1x64xf32> to vector<8x64xf32>
    %376 = arith.mulf %49, %375 : vector<8x64xf32>
    %377 = arith.addf %374, %376 : vector<8x64xf32>
    %378 = arith.negf %4 : vector<8x64xf32>
    %379 = math.exp %378 : vector<8x64xf32>
    %cst_160 = arith.constant 1.000000e+00 : f32
    %380 = vector.broadcast %cst_160 : f32 to vector<8x64xf32>
    %381 = arith.addf %380, %379 : vector<8x64xf32>
    %382 = arith.divf %380, %381 : vector<8x64xf32>
    %383 = arith.mulf %4, %382 : vector<8x64xf32>
    %384 = arith.mulf %377, %383 : vector<8x64xf32>
    %c0_161 = arith.constant 0 : index
    %c0_162 = arith.constant 0 : index
    %385 = vector.load %arg5[%c0_161, %c0_162] : memref<64x32xf32, #tpu.memory_space<vmem>>, vector<64x32xf32>
    %cst_163 = arith.constant dense<0.000000e+00> : vector<8x32xf32>
    %386 = tpu.matmul %384, %385, %cst_163 {dimension_numbers = #tpu.dot_dimension_numbers<[1], [0], [0], [1], [0, 0, 1, 1], [], []>} : vector<8x64xf32>, vector<64x32xf32>, vector<8x32xf32> -> vector<8x32xf32>
    %c0_164 = arith.constant 0 : index
    %c0_165 = arith.constant 0 : index
    %387 = vector.load %arg6[%c0_164, %c0_165] : memref<8x32xf32, #tpu.memory_space<vmem>>, vector<8x32xf32>
    tpu.vector_store %arg6[%c0_164, %c0_165], %386 {strides = array<i32>} : memref<8x32xf32, #tpu.memory_space<vmem>>, vector<8x32xf32>,
    return
  }
  func.func @transform_0(%arg0: i32) -> (i32, i32) {
    %c0_i32 = arith.constant 0 : i32
    %c0_i32_0 = arith.constant 0 : i32
    return %arg0, %c0_i32 : i32, i32
  }
  func.func @transform_1(%arg0: i32) -> (i32, i32) {
    %c0_i32 = arith.constant 0 : i32
    %c0_i32_0 = arith.constant 0 : i32
    %c0_i32_1 = arith.constant 0 : i32
    return %c0_i32, %c0_i32_0 : i32, i32
  }
  func.func @transform_2(%arg0: i32) -> (i32, i32) {
    %c0_i32 = arith.constant 0 : i32
    %c0_i32_0 = arith.constant 0 : i32
    %c0_i32_1 = arith.constant 0 : i32
    return %c0_i32, %c0_i32_0 : i32, i32
  }
  func.func @transform_3(%arg0: i32) -> (i32, i32) {
    %c0_i32 = arith.constant 0 : i32
    %c0_i32_0 = arith.constant 0 : i32
    %c0_i32_1 = arith.constant 0 : i32
    return %c0_i32, %c0_i32_0 : i32, i32
  }
  func.func @transform_4(%arg0: i32) -> (i32, i32) {
    %c0_i32 = arith.constant 0 : i32
    %c0_i32_0 = arith.constant 0 : i32
    %c0_i32_1 = arith.constant 0 : i32
    return %c0_i32, %c0_i32_0 : i32, i32
  }
  func.func @transform_5(%arg0: i32) -> (i32, i32) {
    %c0_i32 = arith.constant 0 : i32
    %c0_i32_0 = arith.constant 0 : i32
    return %arg0, %c0_i32 : i32, i32
  }
}

</mosaic_0001>

<llo_original>
// kernel: tpu_custom_call.1
$region0: #{tpu_custom_call.1}
  #allocation0 [shape = 'u32[]', space=smem, size = 0x4, offset = 0x4, fixed_abs, tag = 'smem constant byte address 0x4 - core index']
  #allocation1 [shape = 'u32[144,128]{1,0:T(1,128)}', space=vmem, size = 0x12000, scoped, tag = 'internal scratch']
  #allocation2 [shape = 'f32[8,16,64]{2,1,0:T(8,128)}', space=vmem, size = 0x10000, scoped, tag = 'scratch operand']
  #allocation3 [shape = 'f32[8,16,64]{2,1,0:T(8,128)}', space=vmem, size = 0x10000, scoped, tag = 'scratch operand']
  #allocation4 [shape = 'f32[8,16,64]{2,1,0:T(8,128)}', space=vmem, size = 0x10000, scoped, tag = 'scratch operand']
  #allocation5 [shape = 'f32[8,64]{1,0:T(8,128)}', space=vmem, size = 0x1000, scoped, tag = 'scratch operand']
  %s0 = inlined_call_operand.hbm [shape: f32[16,32], index: 0, kind: input, shape index: {}]
  %s1 = inlined_call_operand.vmem [shape: f32[32,128], index: 1, kind: input, shape index: {}]
  %s2 = inlined_call_operand.vmem [shape: f32[64,96], index: 2, kind: input, shape index: {}]
  %s3 = inlined_call_operand.hbm [shape: f32[24,64], index: 3, kind: input, shape index: {}]
  %s4 = inlined_call_operand.vmem [shape: f32[64,32], index: 4, kind: input, shape index: {}]
  %s5 = inlined_call_operand.hbm [shape: f32[16,32], index: 5, kind: output, shape index: {}]
  %s6 = sld [smem:[#allocation0]]
  $region61: #{tpu_custom_call.1} parent=0
    _
  %s8 = ssub.s32 1, %s6
  %s9 = scalar_select 0, %s8, %s6
  $region1: #{tpu_custom_call.1} parent=0
    #allocation6 [shape = 'u8[8192]{0}', space=vmem, size = 0x2000, scoped, tag = 'input window, operand 0']
    #allocation7 [shape = 's32[2]{0}', space=sflag, size = 0x8, scoped, tag = 'scoped memory for tpu_custom_call.1']
    #allocation8 [shape = 's32[2]{0}', space=sflag, size = 0x8, scoped, tag = 'scoped memory for tpu_custom_call.1']
    #allocation9 [shape = 'u8[12288]{0}', space=vmem, size = 0x3000, scoped, tag = 'input window, operand 3, single buffered']
    #allocation10 [shape = 's32[1]{0}', space=sflag, size = 0x4, scoped, tag = 'scoped memory for tpu_custom_call.1']
    #allocation11 [shape = 'u8[8192]{0}', space=vmem, size = 0x2000, scoped, tag = 'output window, operand 0']
    %10 = vsyncpa [#allocation7], 0
    %s11 = scalar_lea.sflag [#allocation7], 1
    %12 = vsyncpa %s11, 0
    %13 = vsyncpa [#allocation10], 0
    %14 = vsyncpa [#allocation8], 0
    %s15 = scalar_lea.sflag [#allocation8], 1
    %16 = vsyncpa %s15, 0
    loop: start=0, step=1, limit=4
    $region2: #{tpu_custom_call.1} parent=1 // loop_pre_header
      _
    $region3: #{tpu_custom_call.1} parent=1 // loop_header
      %s18 = sphi 0, %s22
      %p19 = scmp.ge.s32.totalorder %s18, 4
      %s28 = sphi 0, %s30
      %s31 = sphi 0, %s28
      %s32 = sphi 0, %s31
      %s48 = sphi 0, %s32
      %s52 = sphi 0, %s52
      %s54 = sphi 0, %s52
      %s55 = sphi 0, %s54
      %s69 = sphi 0, %s55
      %s73 = sphi 0, %s73
      %s75 = sphi 0, %s73
      %s76 = sphi 0, %s75
      %s90 = sphi 0, %s76
      %s94 = sphi 0, %s94
      %s96 = sphi 0, %s94
      %s97 = sphi 0, %s96
      %s111 = sphi 0, %s97
      %s115 = sphi 0, %s115
      %s117 = sphi 0, %s115
      %s118 = sphi 0, %s117
      %s132 = sphi 0, %s118
      %s138 = sphi 0, %s140
      %s141 = sphi 0, %s138
      %s142 = sphi 0, %s141
      %s158 = sphi 0, %s142
    $region4: #{tpu_custom_call.1} parent=1 // loop_header_branch
      %21 = sbr.rel (%p19) target = $region8
    $region5: #{tpu_custom_call.1} parent=1 // loop_body
      %s23 = ssub.s32 %s18, 1
      %s24 = ssub.s32 %s18, 2
      %s25 = sadd.s32 %s18, 1
      %s26 = ssub.s32 %s18, %s25
      %p27 = scmp.eq.s32.totalorder %s26, 0
      %s29 = sadd.s32 %s28, 1
      %s30 = scalar_select %p27, %s28, %s29
      %p33 = pneg %p27
      %p34 = scmp.eq.s32.totalorder %s18, 1
      %p35 = por %p33, %p34
      %p36 = scmp.ne.s32.totalorder %s28, %s31
      %p37 = scmp.eq.s32.totalorder %s18, 0
      %p38 = por %p36, %p37
      %p39 = scmp.ne.s32.totalorder %s28, %s31
      %p40 = scmp.eq.s32.totalorder %s23, 1
      %p41 = por %p39, %p40
      %p42 = scmp.ne.s32.totalorder %s31, %s32
      %p43 = scmp.eq.s32.totalorder %s23, 0
      %p44 = por %p42, %p43
      %p45 = scmp.ne.s32.totalorder %s31, %s32
      %p46 = scmp.eq.s32.totalorder %s24, 1
      %p47 = por %p45, %p46
      %p49 = scmp.ne.s32.totalorder %s32, %s48
      %p50 = scmp.eq.s32.totalorder %s24, 0
      %p51 = por %p49, %p50
      %s53 = sadd.s32 %s52, 1
      %p56 = scmp.eq.s32.totalorder %s18, 1
      %p57 = scmp.ne.s32.totalorder %s52, %s54
      %p58 = scmp.eq.s32.totalorder %s18, 0
      %p59 = por %p57, %p58
      %p60 = scmp.ne.s32.totalorder %s52, %s54
      %p61 = scmp.eq.s32.totalorder %s23, 1
      %p62 = por %p60, %p61
      %p63 = scmp.ne.s32.totalorder %s54, %s55
      %p64 = scmp.eq.s32.totalorder %s23, 0
      %p65 = por %p63, %p64
      %p66 = scmp.ne.s32.totalorder %s54, %s55
      %p67 = scmp.eq.s32.totalorder %s24, 1
      %p68 = por %p66, %p67
      %p70 = scmp.ne.s32.totalorder %s55, %s69
      %p71 = scmp.eq.s32.totalorder %s24, 0
      %p72 = por %p70, %p71
      %s74 = sadd.s32 %s73, 1
      %p77 = scmp.eq.s32.totalorder %s18, 1
      %p78 = scmp.ne.s32.totalorder %s73, %s75
      %p79 = scmp.eq.s32.totalorder %s18, 0
      %p80 = por %p78, %p79
      %p81 = scmp.ne.s32.totalorder %s73, %s75
      %p82 = scmp.eq.s32.totalorder %s23, 1
      %p83 = por %p81, %p82
      %p84 = scmp.ne.s32.totalorder %s75, %s76
      %p85 = scmp.eq.s32.totalorder %s23, 0
      %p86 = por %p84, %p85
      %p87 = scmp.ne.s32.totalorder %s75, %s76
      %p88 = scmp.eq.s32.totalorder %s24, 1
      %p89 = por %p87, %p88
      %p91 = scmp.ne.s32.totalorder %s76, %s90
      %p92 = scmp.eq.s32.totalorder %s24, 0
      %p93 = por %p91, %p92
      %s95 = sadd.s32 %s94, 1
      %p98 = scmp.eq.s32.totalorder %s18, 1
      %p99 = scmp.ne.s32.totalorder %s94, %s96
      %p100 = scmp.eq.s32.totalorder %s18, 0
      %p101 = por %p99, %p100
      %p102 = scmp.ne.s32.totalorder %s94, %s96
      %p103 = scmp.eq.s32.totalorder %s23, 1
      %p104 = por %p102, %p103
      %p105 = scmp.ne.s32.totalorder %s96, %s97
      %p106 = scmp.eq.s32.totalorder %s23, 0
      %p107 = por %p105, %p106
      %p108 = scmp.ne.s32.totalorder %s96, %s97
      %p109 = scmp.eq.s32.totalorder %s24, 1
      %p110 = por %p108, %p109
      %p112 = scmp.ne.s32.totalorder %s97, %s111
      %p113 = scmp.eq.s32.totalorder %s24, 0
      %p114 = por %p112, %p113
      %s116 = sadd.s32 %s115, 1
      %p119 = scmp.eq.s32.totalorder %s18, 1
      %p120 = scmp.ne.s32.totalorder %s115, %s117
      %p121 = scmp.eq.s32.totalorder %s18, 0
      %p122 = por %p120, %p121
      %p123 = scmp.ne.s32.totalorder %s115, %s117
      %p124 = scmp.eq.s32.totalorder %s23, 1
      %p125 = por %p123, %p124
      %p126 = scmp.ne.s32.totalorder %s117, %s118
      %p127 = scmp.eq.s32.totalorder %s23, 0
      %p128 = por %p126, %p127
      %p129 = scmp.ne.s32.totalorder %s117, %s118
      %p130 = scmp.eq.s32.totalorder %s24, 1
      %p131 = por %p129, %p130
      %p133 = scmp.ne.s32.totalorder %s118, %s132
      %p134 = scmp.eq.s32.totalorder %s24, 0
      %p135 = por %p133, %p134
      %s136 = ssub.s32 %s18, %s25
      %p137 = scmp.eq.s32.totalorder %s136, 0
      %s139 = sadd.s32 %s138, 1
      %s140 = scalar_select %p137, %s138, %s139
      %p143 = pneg %p137
      %p144 = scmp.eq.s32.totalorder %s18, 1
      %p145 = por %p143, %p144
      %p146 = scmp.ne.s32.totalorder %s138, %s141
      %p147 = scmp.eq.s32.totalorder %s18, 0
      %p148 = por %p146, %p147
      %p149 = scmp.ne.s32.totalorder %s138, %s141
      %p150 = scmp.eq.s32.totalorder %s23, 1
      %p151 = por %p149, %p150
      %p152 = scmp.ne.s32.totalorder %s141, %s142
      %p153 = scmp.eq.s32.totalorder %s23, 0
      %p154 = por %p152, %p153
      %p155 = scmp.ne.s32.totalorder %s141, %s142
      %p156 = scmp.eq.s32.totalorder %s24, 1
      %p157 = por %p155, %p156
      %p159 = scmp.ne.s32.totalorder %s142, %s158
      %p160 = scmp.eq.s32.totalorder %s24, 0
      %p161 = por %p159, %p160
      %p162 = scmp.le.s32.totalorder 1, %s18
      %p163 = scmp.lt.s32.totalorder %s18, 3
      %p164 = pnand %p162, %p163
      %p165 = pneg %p164
      // Predicated region
      $region9: #{tpu_custom_call.1} parent=5 // pred_check
        _
      $region10: #{tpu_custom_call.1} parent=5 // pred_check_branch
        %167 = sbr.rel (%p164) target = $region12
      $region11: #{tpu_custom_call.1} parent=5 // pred_region
        %s168 = ssub.s32 %s18, 1
        // Predicated region
        $region13: #{tpu_custom_call.1} parent=11 // pred_check
          %p169 = pneg %p65
        $region14: #{tpu_custom_call.1} parent=11 // pred_check_branch
          %171 = sbr.rel (%p169) target = $region16
        $region15: #{tpu_custom_call.1} parent=11 // pred_region
          _
        $region16: #{tpu_custom_call.1} parent=11 // pred_fallthru
          _
        // Predicated region
        $region17: #{tpu_custom_call.1} parent=11 // pred_check
          %p172 = pneg %p86
        $region18: #{tpu_custom_call.1} parent=11 // pred_check_branch
          %174 = sbr.rel (%p172) target = $region20
        $region19: #{tpu_custom_call.1} parent=11 // pred_region
          _
        $region20: #{tpu_custom_call.1} parent=11 // pred_fallthru
          _
        // Predicated region
        $region21: #{tpu_custom_call.1} parent=11 // pred_check
          %p175 = pneg %p107
        $region22: #{tpu_custom_call.1} parent=11 // pred_check_branch
          %177 = sbr.rel (%p175) target = $region24
        $region23: #{tpu_custom_call.1} parent=11 // pred_region
          %s179 = ssub.s32 384, 384
          %180 = vsyncadd [#allocation10], %s179
          %s181 = sshll.u32 [#allocation9], 4
          %s182 = int_to_ptr.vmem [resolvable:$true] %s181
          %187 = dma.hbm_to_vmem [thread:$0]  %s3, 384, %s182, [#allocation10], 128, 128, 8
        $region24: #{tpu_custom_call.1} parent=11 // pred_fallthru
          _
        // Predicated region
        $region25: #{tpu_custom_call.1} parent=11 // pred_check
          %p188 = pneg %p128
        $region26: #{tpu_custom_call.1} parent=11 // pred_check_branch
          %190 = sbr.rel (%p188) target = $region28
        $region27: #{tpu_custom_call.1} parent=11 // pred_region
          _
        $region28: #{tpu_custom_call.1} parent=11 // pred_fallthru
          _
      $region12: #{tpu_custom_call.1} parent=5 // pred_fallthru
        _
      %p191 = scmp.lt.s32.totalorder %s18, 2
      // Predicated region
      $region29: #{tpu_custom_call.1} parent=5 // pred_check
        %p192 = pneg %p191
      $region30: #{tpu_custom_call.1} parent=5 // pred_check_branch
        %194 = sbr.rel (%p192) target = $region32
      $region31: #{tpu_custom_call.1} parent=5 // pred_region
        // Predicated region
        $region33: #{tpu_custom_call.1} parent=31 // pred_check
          %p195 = pneg %p38
        $region34: #{tpu_custom_call.1} parent=31 // pred_check_branch
          %197 = sbr.rel (%p195) target = $region36
        $region35: #{tpu_custom_call.1} parent=31 // pred_region
          %s198 = sand.u32 %s28, 1
          %s199 = scalar_lea.sflag [#allocation7], %s198
          %s200 = sand.u32 %s28, 1
          %s201 = smul.addr %s200, 8
          %s202 = scalar_lea.vmem [#allocation6], %s201
          %s204 = ssub.s32 128, 128
          %205 = vsyncadd %s199, %s204
          %s206 = smul.addr %s18, 128
          %s207 = scalar_lea.hbm %s0, %s206
          %s209 = sshll.u32 %s202, 4
          %s210 = int_to_ptr.vmem [resolvable:$true] %s209
          %212 = dma.hbm_to_vmem [thread:$0]  %s207, 128, %s210, %s199
        $region36: #{tpu_custom_call.1} parent=31 // pred_fallthru
          _
      $region32: #{tpu_custom_call.1} parent=5 // pred_fallthru
        _
      %p213 = scmp.le.s32.totalorder 1, %s18
      %p214 = scmp.lt.s32.totalorder %s18, 3
      %p215 = pnand %p213, %p214
      %p216 = pneg %p215
      // Predicated region
      $region37: #{tpu_custom_call.1} parent=5 // pred_check
        _
      $region38: #{tpu_custom_call.1} parent=5 // pred_check_branch
        %218 = sbr.rel (%p215) target = $region40
      $region39: #{tpu_custom_call.1} parent=5 // pred_region
        %s219 = ssub.s32 %s18, 1
        %s220 = sand.u32 %s31, 1
        %s221 = scalar_lea.sflag [#allocation7], %s220
        %s222 = sand.u32 %s31, 1
        %s223 = smul.addr %s222, 8
        %s224 = scalar_lea.vmem [#allocation6], %s223
        // Predicated region
        $region41: #{tpu_custom_call.1} parent=39 // pred_check
          %p225 = pneg %p44
        $region42: #{tpu_custom_call.1} parent=39 // pred_check_branch
          %227 = sbr.rel (%p225) target = $region44
        $region43: #{tpu_custom_call.1} parent=39 // pred_region
          %228 = dma.done %s221, 128
        $region44: #{tpu_custom_call.1} parent=39 // pred_fallthru
          _
        // Predicated region
        $region45: #{tpu_custom_call.1} parent=39 // pred_check
          %p229 = pneg %p107
        $region46: #{tpu_custom_call.1} parent=39 // pred_check_branch
          %231 = sbr.rel (%p229) target = $region48
        $region47: #{tpu_custom_call.1} parent=39 // pred_region
          %232 = dma.done [#allocation10], 384
        $region48: #{tpu_custom_call.1} parent=39 // pred_fallthru
          _
        %s233 = sand.u32 %s31, 1
        %s234 = scalar_lea.sflag [#allocation7], %s233
        %s235 = sand.u32 %s31, 1
        %s236 = smul.addr %s235, 8
        %s237 = scalar_lea.vmem [#allocation6], %s236
        %p238 = pneg %p44
        %p239 = pneg %p41
        %p240 = pneg %p65
        %p241 = pneg %p62
        %p242 = pneg %p86
        %p243 = pneg %p83
        %p244 = pneg %p107
        %p245 = pneg %p104
        %p246 = pneg %p128
        %p247 = pneg %p125
        %p248 = pneg %p154
        %p249 = pneg %p151
        %s250 = sand.u32 %s141, 1
        %s251 = scalar_lea.sflag [#allocation8], %s250
        %s252 = sand.u32 %s141, 1
        %s253 = smul.addr %s252, 8
        %s254 = scalar_lea.vmem [#allocation11], %s253
        %v255 = vld [vmem:[%s224] sm:$0xff]
        %v256 = vld [vmem:[%s1] sm:$0xff]
        %v257 = vld [vmem:[%s1 + $0x8] sm:$0xff]
        %v258 = vld [vmem:[%s1 + $0x10] sm:$0xff]
        %v259 = vld [vmem:[%s1 + $0x18] sm:$0xff]
        %vm260 = vcmask 261120
        %v262 = vsel %vm260, %v255, 0
        %264 = vmatprep.subr.mxu0 0.0
        %265 = vmatpush1.msra.mxu0 0.0
        %266 = vmatprep.subr.mxu0 0.0
        %267 = vmatpush1.msra.mxu0 0.0
        %268 = vmatprep.subr.mxu0 0.0
        %269 = vmatpush1.msra.mxu0 0.0
        %270 = vmatprep.subr.mxu0 0.0
        %271 = vmatpush1.msra.mxu0 0.0
        %272 = vmatprep.subr.mxu0 0.0
        %273 = vmatpush1.msra.mxu0 0.0
        %274 = vmatprep.subr.mxu0 0.0
        %275 = vmatpush1.msra.mxu0 0.0
        %276 = vmatprep.subr.mxu0 0.0
        %277 = vmatpush1.msra.mxu0 0.0
        %278 = vmatprep.subr.mxu0 0.0
        %279 = vmatpush1.msra.mxu0 0.0
        %280 = vmatprep.subr.mxu0 0.0
        %281 = vmatpush1.msra.mxu0 0.0
        %282 = vmatprep.subr.mxu0 0.0
        %283 = vmatpush1.msra.mxu0 0.0
        %284 = vmatprep.subr.mxu0 0.0
        %285 = vmatpush1.msra.mxu0 0.0
        %286 = vmatprep.subr.mxu0 0.0
        %287 = vmatpush1.msra.mxu0 0.0
        %288 = vmatprep.subr.mxu0 0.0
        %289 = vmatpush1.msra.mxu0 %v259
        %290 = vmatprep.subr.mxu0 0.0
        %291 = vmatpush1.msra.mxu0 %v258
        %292 = vmatprep.subr.mxu0 0.0
        %293 = vmatpush1.msra.mxu0 %v257
        %294 = vmatprep.subr.mxu0 0.0
        %295 = vmatpush1.msra.mxu0 %v256
        %296 = vmatprep.subr.mxu0 0.0
        %297 = vmatpush2.msra.mxu0 0.0
        %298 = vmatprep.subr.mxu0 0.0
        %299 = vmatpush2.msra.mxu0 0.0
        %300 = vmatprep.subr.mxu0 0.0
        %301 = vmatpush2.msra.mxu0 0.0
        %302 = vmatprep.subr.mxu0 0.0
        %303 = vmatpush2.msra.mxu0 0.0
        %304 = vmatprep.subr.mxu0 0.0
        %305 = vmatpush2.msra.mxu0 0.0
        %306 = vmatprep.subr.mxu0 0.0
        %307 = vmatpush2.msra.mxu0 0.0
        %308 = vmatprep.subr.mxu0 0.0
        %309 = vmatpush2.msra.mxu0 0.0
        %310 = vmatprep.subr.mxu0 0.0
        %311 = vmatpush2.msra.mxu0 0.0
        %312 = vmatprep.subr.mxu0 0.0
        %313 = vmatpush2.msra.mxu0 0.0
        %314 = vmatprep.subr.mxu0 0.0
        %315 = vmatpush2.msra.mxu0 0.0
        %316 = vmatprep.subr.mxu0 0.0
        %317 = vmatpush2.msra.mxu0 0.0
        %318 = vmatprep.subr.mxu0 0.0
        %319 = vmatpush2.msra.mxu0 0.0
        %320 = vmatprep.subr.mxu0 0.0
        %321 = vmatpush2.msra.mxu0 0.0
        %322 = vmatprep.subr.mxu0 0.0
        %323 = vmatpush2.msra.mxu0 0.0
        %324 = vmatprep.subr.mxu0 0.0
        %325 = vmatpush2.msra.mxu0 0.0
        %326 = vmatprep.subr.mxu0 0.0
        %327 = vmatpush2.msra.mxu0 0.0
        %328 = vmatprep.mubr.f32.mxu0 0.0
        %329 = vmatmul.mubr.f32.gmra.mxu0 %v262
        %v330 = vpop.f32.mrf.mxu0
        %v331 = vadd.f32 0.0, %v330
        %v332 = vpop.f32.mrf.mxu0
        %333 = vdwg.mxu0
        %v334 = vld [vmem:[#allocation9] sm:$0xf]
        %v335 = vld [vmem:[#allocation9 + $0x4] sm:$0x1]
        %v336 = vld [vmem:[#allocation9 + $0x5] sm:$0x1]
        %v337 = vld [vmem:[#allocation9 + $0x6] sm:$0x1]
        %v338 = vld [vmem:[#allocation9 + $0x8] sm:$0xff]
        %v339 = vld [vmem:[#allocation9 + $0x10] sm:$0xff]
        %v340 = vlaneseq
        %v341 = vshrl.u32 %v340, 7
        %v342 = vlaneseq
        %v343 = vshrl.u32 %v342, 7
        %v344 = vsub.s32 0, %v343
        %v345 = vrot.slane %v335, %v344
        %v346 = vlaneseq
        %v347 = vshrl.u32 %v346, 7
        %v348 = vsub.s32 3, %v347
        %v349 = vrot.slane %v334, %v348
        %v350 = vmul.f32 %v331, %v349
        %v351 = vadd.f32 %v345, %v350
        %v352 = vrot.slane %v331, 7
        %vm353 = vcmp.ge.s32.totalorder %v341, 1
        %v354 = vsel %vm353, %v352, 0.0
        %v355 = vlaneseq
        %v356 = vshrl.u32 %v355, 7
        %v357 = vsub.s32 2, %v356
        %v358 = vrot.slane %v334, %v357
        %v359 = vmul.f32 %v354, %v358
        %v360 = vadd.f32 %v351, %v359
        %v361 = vrot.slane %v331, 6
        %vm362 = vcmp.ge.s32.totalorder %v341, 2
        %v363 = vsel %vm362, %v361, 0.0
        %v364 = vlaneseq
        %v365 = vshrl.u32 %v364, 7
        %v366 = vsub.s32 1, %v365
        %v367 = vrot.slane %v334, %v366
        %v368 = vmul.f32 %v363, %v367
        %v369 = vadd.f32 %v360, %v368
        %v370 = vrot.slane %v331, 5
        %vm371 = vcmp.ge.s32.totalorder %v341, 3
        %v372 = vsel %vm371, %v370, 0.0
        %v373 = vlaneseq
        %v374 = vshrl.u32 %v373, 7
        %v375 = vsub.s32 0, %v374
        %v376 = vrot.slane %v334, %v375
        %v377 = vmul.f32 %v372, %v376
        %v378 = vadd.f32 %v369, %v377
        %v379 = vxor.u32 %v378, 2147483648
        %v380 = vmul.f32 %v379, 1.442695
        %v381 = vpow.pop %v380
        %v382 = vadd.f32 %v381, 1.0
        %v383 = vrcp.pop %v382
        %v384 = vmul.f32 1.0, %v383
        %v385 = vmul.f32 %v378, %v384
        %v386 = vld [vmem:[%s2] sm:$0xff]
        %v387 = vld [vmem:[%s2 + $0x8] sm:$0xff]
        %v388 = vld [vmem:[%s2 + $0x10] sm:$0xff]
        %v389 = vld [vmem:[%s2 + $0x18] sm:$0xff]
        %v390 = vld [vmem:[%s2 + $0x20] sm:$0xff]
        %v391 = vld [vmem:[%s2 + $0x28] sm:$0xff]
        %v392 = vld [vmem:[%s2 + $0x30] sm:$0xff]
        %v393 = vld [vmem:[%s2 + $0x38] sm:$0xff]
        %vm394 = vcmask 523264
        %v396 = vsel %vm394, %v385, 0
        %398 = vmatprep.subr.mxu0 0.0
        %399 = vmatpush1.msra.mxu0 0.0
        %400 = vmatprep.subr.mxu0 0.0
        %401 = vmatpush1.msra.mxu0 0.0
        %402 = vmatprep.subr.mxu0 0.0
        %403 = vmatpush1.msra.mxu0 0.0
        %404 = vmatprep.subr.mxu0 0.0
        %405 = vmatpush1.msra.mxu0 0.0
        %406 = vmatprep.subr.mxu0 0.0
        %407 = vmatpush1.msra.mxu0 0.0
        %408 = vmatprep.subr.mxu0 0.0
        %409 = vmatpush1.msra.mxu0 0.0
        %410 = vmatprep.subr.mxu0 0.0
        %411 = vmatpush1.msra.mxu0 0.0
        %412 = vmatprep.subr.mxu0 0.0
        %413 = vmatpush1.msra.mxu0 0.0
        %414 = vmatprep.subr.mxu0 0.0
        %415 = vmatpush1.msra.mxu0 %v393
        %416 = vmatprep.subr.mxu0 0.0
        %417 = vmatpush1.msra.mxu0 %v392
        %418 = vmatprep.subr.mxu0 0.0
        %419 = vmatpush1.msra.mxu0 %v391
        %420 = vmatprep.subr.mxu0 0.0
        %421 = vmatpush1.msra.mxu0 %v390
        %422 = vmatprep.subr.mxu0 0.0
        %423 = vmatpush1.msra.mxu0 %v389
        %424 = vmatprep.subr.mxu0 0.0
        %425 = vmatpush1.msra.mxu0 %v388
        %426 = vmatprep.subr.mxu0 0.0
        %427 = vmatpush1.msra.mxu0 %v387
        %428 = vmatprep.subr.mxu0 0.0
        %429 = vmatpush1.msra.mxu0 %v386
        %430 = vmatprep.subr.mxu0 0.0
        %431 = vmatpush2.msra.mxu0 0.0
        %432 = vmatprep.subr.mxu0 0.0
        %433 = vmatpush2.msra.mxu0 0.0
        %434 = vmatprep.subr.mxu0 0.0
        %435 = vmatpush2.msra.mxu0 0.0
        %436 = vmatprep.subr.mxu0 0.0
        %437 = vmatpush2.msra.mxu0 0.0
        %438 = vmatprep.subr.mxu0 0.0
        %439 = vmatpush2.msra.mxu0 0.0
        %440 = vmatprep.subr.mxu0 0.0
        %441 = vmatpush2.msra.mxu0 0.0
        %442 = vmatprep.subr.mxu0 0.0
        %443 = vmatpush2.msra.mxu0 0.0
        %444 = vmatprep.subr.mxu0 0.0
        %445 = vmatpush2.msra.mxu0 0.0
        %446 = vmatprep.subr.mxu0 0.0
        %447 = vmatpush2.msra.mxu0 0.0
        %448 = vmatprep.subr.mxu0 0.0
        %449 = vmatpush2.msra.mxu0 0.0
        %450 = vmatprep.subr.mxu0 0.0
        %451 = vmatpush2.msra.mxu0 0.0
        %452 = vmatprep.subr.mxu0 0.0
        %453 = vmatpush2.msra.mxu0 0.0
        %454 = vmatprep.subr.mxu0 0.0
        %455 = vmatpush2.msra.mxu0 0.0
        %456 = vmatprep.subr.mxu0 0.0
        %457 = vmatpush2.msra.mxu0 0.0
        %458 = vmatprep.subr.mxu0 0.0
        %459 = vmatpush2.msra.mxu0 0.0
        %460 = vmatprep.subr.mxu0 0.0
        %461 = vmatpush2.msra.mxu0 0.0
        %462 = vmatprep.mubr.f32.mxu0 0.0
        %463 = vmatmul.mubr.f32.gmra.mxu0 %v396
        %v464 = vpop.f32.mrf.mxu0
        %v465 = vadd.f32 0.0, %v464
        %v466 = vpop.f32.mrf.mxu0
        %467 = vdwg.mxu0
        %v468 = vlaneseq
        %v469 = vshrl.u32 %v468, 7
        %v470 = vsub.s32 0, %v469
        %v471 = vrot.slane %v336, %v470
        %v472 = vadd.f32 %v465, %v471
        %v473 = vmax.f32 %v472, 0.0
        %vm474 = vcmp.ne.f32.partialorder %v472, %v472
        %v475 = vadd.f32 %v472, 0.0
        %v476 = vand.u32 2147483647, %v472
        %v477 = vsub.f32 0.0, %v476
        %v478 = vmul.f32 %v477, 1.442695
        %v479 = vpow.pop %v478
        %v480 = vadd.f32 %v479, 1.0
        %v481 = vlog2.pop %v480
        %v482 = vmul.f32 %v481, 0.6931472
        %v483 = vmul.f32 -0.5, %v479
        %v484 = vadd.f32 %v483, 1.0
        %v485 = vmul.f32 %v484, %v479
        %v486 = vand.u32 2147483647, %v479
        %vm487 = vcmp.lt.f32.partialorder %v486, 0.0004427343
        %v488 = vsel %vm487, %v485, %v482
        %v489 = vadd.f32 %v473, %v488
        %v490 = vsel %vm474, %v475, %v489
        %492 = vrot.lane.b32.xlu0 %v465, 64
        %v493 = vpop.permute.xlu0 %492
        %495 = vxpose.xlu0.b32.start [1/16] %v493, 128
        %496 = vxpose.xlu0.b32.cont [2/16] 0.0, 128
        %497 = vxpose.xlu0.b32.cont [3/16] 0.0, 128
        %498 = vxpose.xlu0.b32.cont [4/16] 0.0, 128
        %499 = vxpose.xlu0.b32.cont [5/16] 0.0, 128
        %500 = vxpose.xlu0.b32.cont [6/16] 0.0, 128
        %501 = vxpose.xlu0.b32.cont [7/16] 0.0, 128
        %502 = vxpose.xlu0.b32.cont [8/16] 0.0, 128
        %503 = vxpose.xlu0.b32.cont [9/16] 0.0, 128
        %504 = vxpose.xlu0.b32.cont [10/16] 0.0, 128
        %505 = vxpose.xlu0.b32.cont [11/16] 0.0, 128
        %506 = vxpose.xlu0.b32.cont [12/16] 0.0, 128
        %507 = vxpose.xlu0.b32.cont [13/16] 0.0, 128
        %508 = vxpose.xlu0.b32.cont [14/16] 0.0, 128
        %509 = vxpose.xlu0.b32.cont [15/16] 0.0, 128
        %510 = vxpose.xlu0.b32.end [16/16] 0.0, 128
        %v511 = vpop.trf.xlu0
        %v512 = vpop.trf.xlu0
        %v513 = vpop.trf.xlu0
        %v514 = vpop.trf.xlu0
        %v515 = vpop.trf.xlu0
        %v516 = vpop.trf.xlu0
        %v517 = vpop.trf.xlu0
        %v518 = vpop.trf.xlu0
        %v519 = vpop.trf.xlu0
        %v520 = vpop.trf.xlu0
        %v521 = vpop.trf.xlu0
        %v522 = vpop.trf.xlu0
        %v523 = vpop.trf.xlu0
        %v524 = vpop.trf.xlu0
        %v525 = vpop.trf.xlu0
        %v526 = vpop.trf.xlu0
        %527 = vrot.lane.b32.xlu0 %v465, 48
        %v528 = vpop.permute.xlu0 %527
        %530 = vxpose.xlu0.b32.start [1/16] %v528, 128
        %531 = vxpose.xlu0.b32.cont [2/16] 0.0, 128
        %532 = vxpose.xlu0.b32.cont [3/16] 0.0, 128
        %533 = vxpose.xlu0.b32.cont [4/16] 0.0, 128
        %534 = vxpose.xlu0.b32.cont [5/16] 0.0, 128
        %535 = vxpose.xlu0.b32.cont [6/16] 0.0, 128
        %536 = vxpose.xlu0.b32.cont [7/16] 0.0, 128
        %537 = vxpose.xlu0.b32.cont [8/16] 0.0, 128
        %538 = vxpose.xlu0.b32.cont [9/16] 0.0, 128
        %539 = vxpose.xlu0.b32.cont [10/16] 0.0, 128
        %540 = vxpose.xlu0.b32.cont [11/16] 0.0, 128
        %541 = vxpose.xlu0.b32.cont [12/16] 0.0, 128
        %542 = vxpose.xlu0.b32.cont [13/16] 0.0, 128
        %543 = vxpose.xlu0.b32.cont [14/16] 0.0, 128
        %544 = vxpose.xlu0.b32.cont [15/16] 0.0, 128
        %545 = vxpose.xlu0.b32.end [16/16] 0.0, 128
        %v546 = vpop.trf.xlu0
        %v547 = vpop.trf.xlu0
        %v548 = vpop.trf.xlu0
        %v549 = vpop.trf.xlu0
        %v550 = vpop.trf.xlu0
        %v551 = vpop.trf.xlu0
        %v552 = vpop.trf.xlu0
        %v553 = vpop.trf.xlu0
        %v554 = vpop.trf.xlu0
        %v555 = vpop.trf.xlu0
        %v556 = vpop.trf.xlu0
        %v557 = vpop.trf.xlu0
        %v558 = vpop.trf.xlu0
        %v559 = vpop.trf.xlu0
        %v560 = vpop.trf.xlu0
        %v561 = vpop.trf.xlu0
        %v562 = vmul.f32 %v490, %v385
        %v563 = vmul.f32 %v338, 1.442695
        %v564 = vpow.pop %v563
        %v565 = vmul.f32 %v339, 1.442695
        %v566 = vpow.pop %v565
        %v567 = vsub.f32 0.0, %v564
        %v568 = vsub.f32 0.0, %v566
        %v569 = vlaneseq
        %v570 = vshrl.u32 %v569, 7
        %v571 = vsub.s32 0, %v570
        %v572 = vrot.slane %v490, %v571
        %v573 = vmul.f32 %v567, %v572
        %v574 = vmul.f32 %v568, %v572
        %v575 = vmul.f32 %v573, 1.442695
        %v576 = vpow.pop %v575
        %v577 = vmul.f32 %v574, 1.442695
        %v578 = vpow.pop %v577
        %579 = vst.msk [vmem:[#allocation2] sm:$0xff] %vm394, %v576
        %580 = vst.msk [vmem:[#allocation2 + $0x8] sm:$0xff] %vm394, %v578
        %582 = vset.pattern.permute.xlu0 0
        %583 = vperm.xlu0 %582, %v511
        %v584 = vpop.permute.xlu0 %583
        %587 = vset.pattern.permute.xlu0 0
        %588 = vperm.xlu0 %587, %v512
        %v589 = vpop.permute.xlu0 %588
        %v591 = vlaneseq
        %v592 = vshrl.u32 %v591, 7
        %v593 = vsub.s32 0, %v592
        %v594 = vrot.slane %v562, %v593
        %v595 = vmul.f32 %v584, %v594
        %v596 = vmul.f32 %v589, %v594
        %597 = vst.msk [vmem:[#allocation3] sm:$0xff] %vm394, %v595
        %598 = vst.msk [vmem:[#allocation3 + $0x8] sm:$0xff] %vm394, %v596
        %600 = vset.pattern.permute.xlu0 0
        %601 = vperm.xlu0 %600, %v546
        %v602 = vpop.permute.xlu0 %601
        %605 = vset.pattern.permute.xlu0 0
        %606 = vperm.xlu0 %605, %v547
        %v607 = vpop.permute.xlu0 %606
        %609 = vst.msk [vmem:[#allocation4] sm:$0xff] %vm394, %v602
        %610 = vst.msk [vmem:[#allocation4 + $0x8] sm:$0xff] %vm394, %v607
        %v611 = vlaneseq
        %v612 = vshrl.u32 %v611, 7
        %v613 = vsub.s32 1, %v612
        %v614 = vrot.slane %v490, %v613
        %v615 = vmul.f32 %v567, %v614
        %v616 = vmul.f32 %v568, %v614
        %v617 = vmul.f32 %v615, 1.442695
        %v618 = vpow.pop %v617
        %v619 = vmul.f32 %v616, 1.442695
        %v620 = vpow.pop %v619
        %s621 = scalar_lea.vmem [#allocation2], 16
        %622 = vst.msk [vmem:[%s621] sm:$0xff] %vm394, %v618
        %623 = vst.msk [vmem:[%s621 + $0x8] sm:$0xff] %vm394, %v620
        %624 = vset.pattern.permute.xlu0 1
        %625 = vperm.xlu0 %624, %v511
        %v626 = vpop.permute.xlu0 %625
        %628 = vset.pattern.permute.xlu0 1
        %629 = vperm.xlu0 %628, %v512
        %v630 = vpop.permute.xlu0 %629
        %v632 = vlaneseq
        %v633 = vshrl.u32 %v632, 7
        %v634 = vsub.s32 1, %v633
        %v635 = vrot.slane %v562, %v634
        %v636 = vmul.f32 %v626, %v635
        %v637 = vmul.f32 %v630, %v635
        %s638 = scalar_lea.vmem [#allocation3], 16
        %639 = vst.msk [vmem:[%s638] sm:$0xff] %vm394, %v636
        %640 = vst.msk [vmem:[%s638 + $0x8] sm:$0xff] %vm394, %v637
        %641 = vset.pattern.permute.xlu0 1
        %642 = vperm.xlu0 %641, %v546
        %v643 = vpop.permute.xlu0 %642
        %645 = vset.pattern.permute.xlu0 1
        %646 = vperm.xlu0 %645, %v547
        %v647 = vpop.permute.xlu0 %646
        %s649 = scalar_lea.vmem [#allocation4], 16
        %650 = vst.msk [vmem:[%s649] sm:$0xff] %vm394, %v643
        %651 = vst.msk [vmem:[%s649 + $0x8] sm:$0xff] %vm394, %v647
        %v652 = vlaneseq
        %v653 = vshrl.u32 %v652, 7
        %v654 = vsub.s32 2, %v653
        %v655 = vrot.slane %v490, %v654
        %v656 = vmul.f32 %v567, %v655
        %v657 = vmul.f32 %v568, %v655
        %v658 = vmul.f32 %v656, 1.442695
        %v659 = vpow.pop %v658
        %v660 = vmul.f32 %v657, 1.442695
        %v661 = vpow.pop %v660
        %s662 = scalar_lea.vmem [#allocation2], 32
        %663 = vst.msk [vmem:[%s662] sm:$0xff] %vm394, %v659
        %664 = vst.msk [vmem:[%s662 + $0x8] sm:$0xff] %vm394, %v661
        %665 = vset.pattern.permute.xlu0 2
        %666 = vperm.xlu0 %665, %v511
        %v667 = vpop.permute.xlu0 %666
        %669 = vset.pattern.permute.xlu0 2
        %670 = vperm.xlu0 %669, %v512
        %v671 = vpop.permute.xlu0 %670
        %v673 = vlaneseq
        %v674 = vshrl.u32 %v673, 7
        %v675 = vsub.s32 2, %v674
        %v676 = vrot.slane %v562, %v675
        %v677 = vmul.f32 %v667, %v676
        %v678 = vmul.f32 %v671, %v676
        %s679 = scalar_lea.vmem [#allocation3], 32
        %680 = vst.msk [vmem:[%s679] sm:$0xff] %vm394, %v677
        %681 = vst.msk [vmem:[%s679 + $0x8] sm:$0xff] %vm394, %v678
        %682 = vset.pattern.permute.xlu0 2
        %683 = vperm.xlu0 %682, %v546
        %v684 = vpop.permute.xlu0 %683
        %686 = vset.pattern.permute.xlu0 2
        %687 = vperm.xlu0 %686, %v547
        %v688 = vpop.permute.xlu0 %687
        %s690 = scalar_lea.vmem [#allocation4], 32
        %691 = vst.msk [vmem:[%s690] sm:$0xff] %vm394, %v684
        %692 = vst.msk [vmem:[%s690 + $0x8] sm:$0xff] %vm394, %v688
        %v693 = vlaneseq
        %v694 = vshrl.u32 %v693, 7
        %v695 = vsub.s32 3, %v694
        %v696 = vrot.slane %v490, %v695
        %v697 = vmul.f32 %v567, %v696
        %v698 = vmul.f32 %v568, %v696
        %v699 = vmul.f32 %v697, 1.442695
        %v700 = vpow.pop %v699
        %v701 = vmul.f32 %v698, 1.442695
        %v702 = vpow.pop %v701
        %s703 = scalar_lea.vmem [#allocation2], 48
        %704 = vst.msk [vmem:[%s703] sm:$0xff] %vm394, %v700
        %705 = vst.msk [vmem:[%s703 + $0x8] sm:$0xff] %vm394, %v702
        %706 = vset.pattern.permute.xlu0 3
        %707 = vperm.xlu0 %706, %v511
        %v708 = vpop.permute.xlu0 %707
        %710 = vset.pattern.permute.xlu0 3
        %711 = vperm.xlu0 %710, %v512
        %v712 = vpop.permute.xlu0 %711
        %v714 = vlaneseq
        %v715 = vshrl.u32 %v714, 7
        %v716 = vsub.s32 3, %v715
        %v717 = vrot.slane %v562, %v716
        %v718 = vmul.f32 %v708, %v717
        %v719 = vmul.f32 %v712, %v717
        %s720 = scalar_lea.vmem [#allocation3], 48
        %721 = vst.msk [vmem:[%s720] sm:$0xff] %vm394, %v718
        %722 = vst.msk [vmem:[%s720 + $0x8] sm:$0xff] %vm394, %v719
        %723 = vset.pattern.permute.xlu0 3
        %724 = vperm.xlu0 %723, %v546
        %v725 = vpop.permute.xlu0 %724
        %727 = vset.pattern.permute.xlu0 3
        %728 = vperm.xlu0 %727, %v547
        %v729 = vpop.permute.xlu0 %728
        %s731 = scalar_lea.vmem [#allocation4], 48
        %732 = vst.msk [vmem:[%s731] sm:$0xff] %vm394, %v725
        %733 = vst.msk [vmem:[%s731 + $0x8] sm:$0xff] %vm394, %v729
        %v734 = vlaneseq
        %v735 = vshrl.u32 %v734, 7
        %v736 = vsub.s32 4, %v735
        %v737 = vrot.slane %v490, %v736
        %v738 = vmul.f32 %v567, %v737
        %v739 = vmul.f32 %v568, %v737
        %v740 = vmul.f32 %v738, 1.442695
        %v741 = vpow.pop %v740
        %v742 = vmul.f32 %v739, 1.442695
        %v743 = vpow.pop %v742
        %s744 = scalar_lea.vmem [#allocation2], 64
        %745 = vst.msk [vmem:[%s744] sm:$0xff] %vm394, %v741
        %746 = vst.msk [vmem:[%s744 + $0x8] sm:$0xff] %vm394, %v743
        %747 = vset.pattern.permute.xlu0 4
        %748 = vperm.xlu0 %747, %v511
        %v749 = vpop.permute.xlu0 %748
        %751 = vset.pattern.permute.xlu0 4
        %752 = vperm.xlu0 %751, %v512
        %v753 = vpop.permute.xlu0 %752
        %v755 = vlaneseq
        %v756 = vshrl.u32 %v755, 7
        %v757 = vsub.s32 4, %v756
        %v758 = vrot.slane %v562, %v757
        %v759 = vmul.f32 %v749, %v758
        %v760 = vmul.f32 %v753, %v758
        %s761 = scalar_lea.vmem [#allocation3], 64
        %762 = vst.msk [vmem:[%s761] sm:$0xff] %vm394, %v759
        %763 = vst.msk [vmem:[%s761 + $0x8] sm:$0xff] %vm394, %v760
        %764 = vset.pattern.permute.xlu0 4
        %765 = vperm.xlu0 %764, %v546
        %v766 = vpop.permute.xlu0 %765
        %768 = vset.pattern.permute.xlu0 4
        %769 = vperm.xlu0 %768, %v547
        %v770 = vpop.permute.xlu0 %769
        %s772 = scalar_lea.vmem [#allocation4], 64
        %773 = vst.msk [vmem:[%s772] sm:$0xff] %vm394, %v766
        %774 = vst.msk [vmem:[%s772 + $0x8] sm:$0xff] %vm394, %v770
        %v775 = vlaneseq
        %v776 = vshrl.u32 %v775, 7
        %v777 = vsub.s32 5, %v776
        %v778 = vrot.slane %v490, %v777
        %v779 = vmul.f32 %v567, %v778
        %v780 = vmul.f32 %v568, %v778
        %v781 = vmul.f32 %v779, 1.442695
        %v782 = vpow.pop %v781
        %v783 = vmul.f32 %v780, 1.442695
        %v784 = vpow.pop %v783
        %s785 = scalar_lea.vmem [#allocation2], 80
        %786 = vst.msk [vmem:[%s785] sm:$0xff] %vm394, %v782
        %787 = vst.msk [vmem:[%s785 + $0x8] sm:$0xff] %vm394, %v784
        %788 = vset.pattern.permute.xlu0 5
        %789 = vperm.xlu0 %788, %v511
        %v790 = vpop.permute.xlu0 %789
        %792 = vset.pattern.permute.xlu0 5
        %793 = vperm.xlu0 %792, %v512
        %v794 = vpop.permute.xlu0 %793
        %v796 = vlaneseq
        %v797 = vshrl.u32 %v796, 7
        %v798 = vsub.s32 5, %v797
        %v799 = vrot.slane %v562, %v798
        %v800 = vmul.f32 %v790, %v799
        %v801 = vmul.f32 %v794, %v799
        %s802 = scalar_lea.vmem [#allocation3], 80
        %803 = vst.msk [vmem:[%s802] sm:$0xff] %vm394, %v800
        %804 = vst.msk [vmem:[%s802 + $0x8] sm:$0xff] %vm394, %v801
        %805 = vset.pattern.permute.xlu0 5
        %806 = vperm.xlu0 %805, %v546
        %v807 = vpop.permute.xlu0 %806
        %809 = vset.pattern.permute.xlu0 5
        %810 = vperm.xlu0 %809, %v547
        %v811 = vpop.permute.xlu0 %810
        %s813 = scalar_lea.vmem [#allocation4], 80
        %814 = vst.msk [vmem:[%s813] sm:$0xff] %vm394, %v807
        %815 = vst.msk [vmem:[%s813 + $0x8] sm:$0xff] %vm394, %v811
        %v816 = vlaneseq
        %v817 = vshrl.u32 %v816, 7
        %v818 = vsub.s32 6, %v817
        %v819 = vrot.slane %v490, %v818
        %v820 = vmul.f32 %v567, %v819
        %v821 = vmul.f32 %v568, %v819
        %v822 = vmul.f32 %v820, 1.442695
        %v823 = vpow.pop %v822
        %v824 = vmul.f32 %v821, 1.442695
        %v825 = vpow.pop %v824
        %s826 = scalar_lea.vmem [#allocation2], 96
        %827 = vst.msk [vmem:[%s826] sm:$0xff] %vm394, %v823
        %828 = vst.msk [vmem:[%s826 + $0x8] sm:$0xff] %vm394, %v825
        %829 = vset.pattern.permute.xlu0 6
        %830 = vperm.xlu0 %829, %v511
        %v831 = vpop.permute.xlu0 %830
        %833 = vset.pattern.permute.xlu0 6
        %834 = vperm.xlu0 %833, %v512
        %v835 = vpop.permute.xlu0 %834
        %v837 = vlaneseq
        %v838 = vshrl.u32 %v837, 7
        %v839 = vsub.s32 6, %v838
        %v840 = vrot.slane %v562, %v839
        %v841 = vmul.f32 %v831, %v840
        %v842 = vmul.f32 %v835, %v840
        %s843 = scalar_lea.vmem [#allocation3], 96
        %844 = vst.msk [vmem:[%s843] sm:$0xff] %vm394, %v841
        %845 = vst.msk [vmem:[%s843 + $0x8] sm:$0xff] %vm394, %v842
        %846 = vset.pattern.permute.xlu0 6
        %847 = vperm.xlu0 %846, %v546
        %v848 = vpop.permute.xlu0 %847
        %850 = vset.pattern.permute.xlu0 6
        %851 = vperm.xlu0 %850, %v547
        %v852 = vpop.permute.xlu0 %851
        %s854 = scalar_lea.vmem [#allocation4], 96
        %855 = vst.msk [vmem:[%s854] sm:$0xff] %vm394, %v848
        %856 = vst.msk [vmem:[%s854 + $0x8] sm:$0xff] %vm394, %v852
        %v857 = vlaneseq
        %v858 = vshrl.u32 %v857, 7
        %v859 = vsub.s32 7, %v858
        %v860 = vrot.slane %v490, %v859
        %v861 = vmul.f32 %v567, %v860
        %v862 = vmul.f32 %v568, %v860
        %v863 = vmul.f32 %v861, 1.442695
        %v864 = vpow.pop %v863
        %v865 = vmul.f32 %v862, 1.442695
        %v866 = vpow.pop %v865
        %s867 = scalar_lea.vmem [#allocation2], 112
        %868 = vst.msk [vmem:[%s867] sm:$0xff] %vm394, %v864
        %869 = vst.msk [vmem:[%s867 + $0x8] sm:$0xff] %vm394, %v866
        %870 = vset.pattern.permute.xlu0 7
        %871 = vperm.xlu0 %870, %v511
        %v872 = vpop.permute.xlu0 %871
        %874 = vset.pattern.permute.xlu0 7
        %875 = vperm.xlu0 %874, %v512
        %v876 = vpop.permute.xlu0 %875
        %v878 = vlaneseq
        %v879 = vshrl.u32 %v878, 7
        %v880 = vsub.s32 7, %v879
        %v881 = vrot.slane %v562, %v880
        %v882 = vmul.f32 %v872, %v881
        %v883 = vmul.f32 %v876, %v881
        %s884 = scalar_lea.vmem [#allocation3], 112
        %885 = vst.msk [vmem:[%s884] sm:$0xff] %vm394, %v882
        %886 = vst.msk [vmem:[%s884 + $0x8] sm:$0xff] %vm394, %v883
        %887 = vset.pattern.permute.xlu0 7
        %888 = vperm.xlu0 %887, %v546
        %v889 = vpop.permute.xlu0 %888
        %891 = vset.pattern.permute.xlu0 7
        %892 = vperm.xlu0 %891, %v547
        %v893 = vpop.permute.xlu0 %892
        %s895 = scalar_lea.vmem [#allocation4], 112
        %896 = vst.msk [vmem:[%s895] sm:$0xff] %vm394, %v889
        %897 = vst.msk [vmem:[%s895 + $0x8] sm:$0xff] %vm394, %v893
        %v898 = vld [vmem:[#allocation2] sm:$0xff]
        %v899 = vld [vmem:[#allocation2 + $0x8] sm:$0xff]
        %v900 = vmul.f32 %v898, 0.0
        %v901 = vmul.f32 %v899, 0.0
        %v902 = vld [vmem:[#allocation3] sm:$0xff]
        %v903 = vld [vmem:[#allocation3 + $0x8] sm:$0xff]
        %v904 = vadd.f32 %v900, %v902
        %v905 = vadd.f32 %v901, %v903
        %v906 = vld [vmem:[#allocation4] sm:$0xff]
        %v907 = vld [vmem:[#allocation4 + $0x8] sm:$0xff]
        %v908 = vmul.f32 %v904, %v906
        %v909 = vmul.f32 %v905, %v907
        %v910 = vsel %vm394, %v908, 0.0
        %v911 = vsel %vm394, %v909, 0.0
        %v912 = vadd.f32 %v910, %v911
        %v913 = vrot.slane %v912, 4
        %v914 = vadd.f32 %v912, %v913
        %v915 = vrot.slane %v914, 2
        %v916 = vadd.f32 %v914, %v915
        %v917 = vrot.slane %v916, 1
        %v918 = vadd.f32 %v916, %v917
        %vm919 = vcmask 516096
        %920 = vst.msk [vmem:[#allocation5] sm:$0x1] %vm919, %v918
        %v921 = vld [vmem:[%s621] sm:$0xff]
        %v922 = vld [vmem:[%s621 + $0x8] sm:$0xff]
        %v923 = vmul.f32 %v921, %v904
        %v924 = vmul.f32 %v922, %v905
        %v925 = vld [vmem:[%s638] sm:$0xff]
        %v926 = vld [vmem:[%s638 + $0x8] sm:$0xff]
        %v927 = vadd.f32 %v923, %v925
        %v928 = vadd.f32 %v924, %v926
        %v929 = vld [vmem:[%s649] sm:$0xff]
        %v930 = vld [vmem:[%s649 + $0x8] sm:$0xff]
        %v931 = vmul.f32 %v927, %v929
        %v932 = vmul.f32 %v928, %v930
        %v933 = vsel %vm394, %v931, 0.0
        %v934 = vsel %vm394, %v932, 0.0
        %v935 = vadd.f32 %v933, %v934
        %v936 = vrot.slane %v935, 4
        %v937 = vadd.f32 %v935, %v936
        %v938 = vrot.slane %v937, 2
        %v939 = vadd.f32 %v937, %v938
        %v940 = vrot.slane %v939, 1
        %v941 = vadd.f32 %v939, %v940
        %942 = vst.msk [vmem:[#allocation5 + $0x1] sm:$0x1] %vm919, %v941
        %v943 = vld [vmem:[%s662] sm:$0xff]
        %v944 = vld [vmem:[%s662 + $0x8] sm:$0xff]
        %v945 = vmul.f32 %v943, %v927
        %v946 = vmul.f32 %v944, %v928
        %v947 = vld [vmem:[%s679] sm:$0xff]
        %v948 = vld [vmem:[%s679 + $0x8] sm:$0xff]
        %v949 = vadd.f32 %v945, %v947
        %v950 = vadd.f32 %v946, %v948
        %v951 = vld [vmem:[%s690] sm:$0xff]
        %v952 = vld [vmem:[%s690 + $0x8] sm:$0xff]
        %v953 = vmul.f32 %v949, %v951
        %v954 = vmul.f32 %v950, %v952
        %v955 = vsel %vm394, %v953, 0.0
        %v956 = vsel %vm394, %v954, 0.0
        %v957 = vadd.f32 %v955, %v956
        %v958 = vrot.slane %v957, 4
        %v959 = vadd.f32 %v957, %v958
        %v960 = vrot.slane %v959, 2
        %v961 = vadd.f32 %v959, %v960
        %v962 = vrot.slane %v961, 1
        %v963 = vadd.f32 %v961, %v962
        %964 = vst.msk [vmem:[#allocation5 + $0x2] sm:$0x1] %vm919, %v963
        %v965 = vld [vmem:[%s703] sm:$0xff]
        %v966 = vld [vmem:[%s703 + $0x8] sm:$0xff]
        %v967 = vmul.f32 %v965, %v949
        %v968 = vmul.f32 %v966, %v950
        %v969 = vld [vmem:[%s720] sm:$0xff]
        %v970 = vld [vmem:[%s720 + $0x8] sm:$0xff]
        %v971 = vadd.f32 %v967, %v969
        %v972 = vadd.f32 %v968, %v970
        %v973 = vld [vmem:[%s731] sm:$0xff]
        %v974 = vld [vmem:[%s731 + $0x8] sm:$0xff]
        %v975 = vmul.f32 %v971, %v973
        %v976 = vmul.f32 %v972, %v974
        %v977 = vsel %vm394, %v975, 0.0
        %v978 = vsel %vm394, %v976, 0.0
        %v979 = vadd.f32 %v977, %v978
        %v980 = vrot.slane %v979, 4
        %v981 = vadd.f32 %v979, %v980
        %v982 = vrot.slane %v981, 2
        %v983 = vadd.f32 %v981, %v982
        %v984 = vrot.slane %v983, 1
        %v985 = vadd.f32 %v983, %v984
        %986 = vst.msk [vmem:[#allocation5 + $0x3] sm:$0x1] %vm919, %v985
        %v987 = vld [vmem:[%s744] sm:$0xff]
        %v988 = vld [vmem:[%s744 + $0x8] sm:$0xff]
        %v989 = vmul.f32 %v987, %v971
        %v990 = vmul.f32 %v988, %v972
        %v991 = vld [vmem:[%s761] sm:$0xff]
        %v992 = vld [vmem:[%s761 + $0x8] sm:$0xff]
        %v993 = vadd.f32 %v989, %v991
        %v994 = vadd.f32 %v990, %v992
        %v995 = vld [vmem:[%s772] sm:$0xff]
        %v996 = vld [vmem:[%s772 + $0x8] sm:$0xff]
        %v997 = vmul.f32 %v993, %v995
        %v998 = vmul.f32 %v994, %v996
        %v999 = vsel %vm394, %v997, 0.0
        %v1000 = vsel %vm394, %v998, 0.0
        %v1001 = vadd.f32 %v999, %v1000
        %v1002 = vrot.slane %v1001, 4
        %v1003 = vadd.f32 %v1001, %v1002
        %v1004 = vrot.slane %v1003, 2
        %v1005 = vadd.f32 %v1003, %v1004
        %v1006 = vrot.slane %v1005, 1
        %v1007 = vadd.f32 %v1005, %v1006
        %1008 = vst.msk [vmem:[#allocation5 + $0x4] sm:$0x1] %vm919, %v1007
        %v1009 = vld [vmem:[%s785] sm:$0xff]
        %v1010 = vld [vmem:[%s785 + $0x8] sm:$0xff]
        %v1011 = vmul.f32 %v1009, %v993
        %v1012 = vmul.f32 %v1010, %v994
        %v1013 = vld [vmem:[%s802] sm:$0xff]
        %v1014 = vld [vmem:[%s802 + $0x8] sm:$0xff]
        %v1015 = vadd.f32 %v1011, %v1013
        %v1016 = vadd.f32 %v1012, %v1014
        %v1017 = vld [vmem:[%s813] sm:$0xff]
        %v1018 = vld [vmem:[%s813 + $0x8] sm:$0xff]
        %v1019 = vmul.f32 %v1015, %v1017
        %v1020 = vmul.f32 %v1016, %v1018
        %v1021 = vsel %vm394, %v1019, 0.0
        %v1022 = vsel %vm394, %v1020, 0.0
        %v1023 = vadd.f32 %v1021, %v1022
        %v1024 = vrot.slane %v1023, 4
        %v1025 = vadd.f32 %v1023, %v1024
        %v1026 = vrot.slane %v1025, 2
        %v1027 = vadd.f32 %v1025, %v1026
        %v1028 = vrot.slane %v1027, 1
        %v1029 = vadd.f32 %v1027, %v1028
        %1030 = vst.msk [vmem:[#allocation5 + $0x5] sm:$0x1] %vm919, %v1029
        %v1031 = vld [vmem:[%s826] sm:$0xff]
        %v1032 = vld [vmem:[%s826 + $0x8] sm:$0xff]
        %v1033 = vmul.f32 %v1031, %v1015
        %v1034 = vmul.f32 %v1032, %v1016
        %v1035 = vld [vmem:[%s843] sm:$0xff]
        %v1036 = vld [vmem:[%s843 + $0x8] sm:$0xff]
        %v1037 = vadd.f32 %v1033, %v1035
        %v1038 = vadd.f32 %v1034, %v1036
        %v1039 = vld [vmem:[%s854] sm:$0xff]
        %v1040 = vld [vmem:[%s854 + $0x8] sm:$0xff]
        %v1041 = vmul.f32 %v1037, %v1039
        %v1042 = vmul.f32 %v1038, %v1040
        %v1043 = vsel %vm394, %v1041, 0.0
        %v1044 = vsel %vm394, %v1042, 0.0
        %v1045 = vadd.f32 %v1043, %v1044
        %v1046 = vrot.slane %v1045, 4
        %v1047 = vadd.f32 %v1045, %v1046
        %v1048 = vrot.slane %v1047, 2
        %v1049 = vadd.f32 %v1047, %v1048
        %v1050 = vrot.slane %v1049, 1
        %v1051 = vadd.f32 %v1049, %v1050
        %1052 = vst.msk [vmem:[#allocation5 + $0x6] sm:$0x1] %vm919, %v1051
        %v1053 = vld [vmem:[%s867] sm:$0xff]
        %v1054 = vld [vmem:[%s867 + $0x8] sm:$0xff]
        %v1055 = vmul.f32 %v1053, %v1037
        %v1056 = vmul.f32 %v1054, %v1038
        %v1057 = vld [vmem:[%s884] sm:$0xff]
        %v1058 = vld [vmem:[%s884 + $0x8] sm:$0xff]
        %v1059 = vadd.f32 %v1055, %v1057
        %v1060 = vadd.f32 %v1056, %v1058
        %v1061 = vld [vmem:[%s895] sm:$0xff]
        %v1062 = vld [vmem:[%s895 + $0x8] sm:$0xff]
        %v1063 = vmul.f32 %v1059, %v1061
        %v1064 = vmul.f32 %v1060, %v1062
        %v1065 = vsel %vm394, %v1063, 0.0
        %v1066 = vsel %vm394, %v1064, 0.0
        %v1067 = vadd.f32 %v1065, %v1066
        %v1068 = vrot.slane %v1067, 4
        %v1069 = vadd.f32 %v1067, %v1068
        %v1070 = vrot.slane %v1069, 2
        %v1071 = vadd.f32 %v1069, %v1070
        %v1072 = vrot.slane %v1071, 1
        %v1073 = vadd.f32 %v1071, %v1072
        %1074 = vst.msk [vmem:[#allocation5 + $0x7] sm:$0x1] %vm919, %v1073
        %v1075 = vld [vmem:[#allocation5] sm:$0xff]
        %v1076 = vlaneseq
        %v1077 = vshrl.u32 %v1076, 7
        %v1078 = vsub.s32 0, %v1077
        %v1079 = vrot.slane %v337, %v1078
        %v1080 = vmul.f32 %v385, %v1079
        %v1081 = vadd.f32 %v1075, %v1080
        %v1082 = vxor.u32 %v331, 2147483648
        %v1083 = vmul.f32 %v1082, 1.442695
        %v1084 = vpow.pop %v1083
        %v1085 = vadd.f32 %v1084, 1.0
        %v1086 = vrcp.pop %v1085
        %v1087 = vmul.f32 1.0, %v1086
        %v1088 = vmul.f32 %v331, %v1087
        %1090 = vrot.lane.b32.xlu0 %v1088, 64
        %v1091 = vpop.permute.xlu0 %1090
        %v1093 = vmul.f32 %v1081, %v1091
        %v1094 = vld [vmem:[%s4] sm:$0xff]
        %v1095 = vld [vmem:[%s4 + $0x8] sm:$0xff]
        %v1096 = vld [vmem:[%s4 + $0x10] sm:$0xff]
        %v1097 = vld [vmem:[%s4 + $0x18] sm:$0xff]
        %v1098 = vld [vmem:[%s4 + $0x20] sm:$0xff]
        %v1099 = vld [vmem:[%s4 + $0x28] sm:$0xff]
        %v1100 = vld [vmem:[%s4 + $0x30] sm:$0xff]
        %v1101 = vld [vmem:[%s4 + $0x38] sm:$0xff]
        %v1103 = vsel %vm394, %v1093, 0
        %1105 = vmatprep.subr.mxu0 0.0
        %1106 = vmatpush1.msra.mxu0 0.0
        %1107 = vmatprep.subr.mxu0 0.0
        %1108 = vmatpush1.msra.mxu0 0.0
        %1109 = vmatprep.subr.mxu0 0.0
        %1110 = vmatpush1.msra.mxu0 0.0
        %1111 = vmatprep.subr.mxu0 0.0
        %1112 = vmatpush1.msra.mxu0 0.0
        %1113 = vmatprep.subr.mxu0 0.0
        %1114 = vmatpush1.msra.mxu0 0.0
        %1115 = vmatprep.subr.mxu0 0.0
        %1116 = vmatpush1.msra.mxu0 0.0
        %1117 = vmatprep.subr.mxu0 0.0
        %1118 = vmatpush1.msra.mxu0 0.0
        %1119 = vmatprep.subr.mxu0 0.0
        %1120 = vmatpush1.msra.mxu0 0.0
        %1121 = vmatprep.subr.mxu0 0.0
        %1122 = vmatpush1.msra.mxu0 %v1101
        %1123 = vmatprep.subr.mxu0 0.0
        %1124 = vmatpush1.msra.mxu0 %v1100
        %1125 = vmatprep.subr.mxu0 0.0
        %1126 = vmatpush1.msra.mxu0 %v1099
        %1127 = vmatprep.subr.mxu0 0.0
        %1128 = vmatpush1.msra.mxu0 %v1098
        %1129 = vmatprep.subr.mxu0 0.0
        %1130 = vmatpush1.msra.mxu0 %v1097
        %1131 = vmatprep.subr.mxu0 0.0
        %1132 = vmatpush1.msra.mxu0 %v1096
        %1133 = vmatprep.subr.mxu0 0.0
        %1134 = vmatpush1.msra.mxu0 %v1095
        %1135 = vmatprep.subr.mxu0 0.0
        %1136 = vmatpush1.msra.mxu0 %v1094
        %1137 = vmatprep.subr.mxu0 0.0
        %1138 = vmatpush2.msra.mxu0 0.0
        %1139 = vmatprep.subr.mxu0 0.0
        %1140 = vmatpush2.msra.mxu0 0.0
        %1141 = vmatprep.subr.mxu0 0.0
        %1142 = vmatpush2.msra.mxu0 0.0
        %1143 = vmatprep.subr.mxu0 0.0
        %1144 = vmatpush2.msra.mxu0 0.0
        %1145 = vmatprep.subr.mxu0 0.0
        %1146 = vmatpush2.msra.mxu0 0.0
        %1147 = vmatprep.subr.mxu0 0.0
        %1148 = vmatpush2.msra.mxu0 0.0
        %1149 = vmatprep.subr.mxu0 0.0
        %1150 = vmatpush2.msra.mxu0 0.0
        %1151 = vmatprep.subr.mxu0 0.0
        %1152 = vmatpush2.msra.mxu0 0.0
        %1153 = vmatprep.subr.mxu0 0.0
        %1154 = vmatpush2.msra.mxu0 0.0
        %1155 = vmatprep.subr.mxu0 0.0
        %1156 = vmatpush2.msra.mxu0 0.0
        %1157 = vmatprep.subr.mxu0 0.0
        %1158 = vmatpush2.msra.mxu0 0.0
        %1159 = vmatprep.subr.mxu0 0.0
        %1160 = vmatpush2.msra.mxu0 0.0
        %1161 = vmatprep.subr.mxu0 0.0
        %1162 = vmatpush2.msra.mxu0 0.0
        %1163 = vmatprep.subr.mxu0 0.0
        %1164 = vmatpush2.msra.mxu0 0.0
        %1165 = vmatprep.subr.mxu0 0.0
        %1166 = vmatpush2.msra.mxu0 0.0
        %1167 = vmatprep.subr.mxu0 0.0
        %1168 = vmatpush2.msra.mxu0 0.0
        %1169 = vmatprep.mubr.f32.mxu0 0.0
        %1170 = vmatmul.mubr.f32.gmra.mxu0 %v1103
        %v1171 = vpop.f32.mrf.mxu0
        %v1172 = vadd.f32 0.0, %v1171
        %v1173 = vpop.f32.mrf.mxu0
        %1174 = vdwg.mxu0
        %1175 = vst.msk [vmem:[%s254] sm:$0xff] %vm260, %v1172
        %s1176 = sand.u32 %s141, 1
        %s1177 = scalar_lea.sflag [#allocation8], %s1176
        %s1178 = sand.u32 %s141, 1
        %s1179 = smul.addr %s1178, 8
        %s1180 = scalar_lea.vmem [#allocation11], %s1179
        // Predicated region
        $region49: #{tpu_custom_call.1} parent=39 // pred_check
          %p1181 = pneg %p151
        $region50: #{tpu_custom_call.1} parent=39 // pred_check_branch
          %1183 = sbr.rel (%p1181) target = $region52
        $region51: #{tpu_custom_call.1} parent=39 // pred_region
          %s1185 = ssub.s32 128, 128
          %1186 = vsyncadd %s1177, %s1185
          %s1187 = smul.addr %s23, 128
          %s1188 = scalar_lea.hbm %s5, %s1187
          %s1190 = sshll.u32 %s1180, 4
          %s1191 = int_to_ptr.vmem [resolvable:$true] %s1190
          %1193 = dma.vmem_to_hbm [thread:$0]  %s1191, 128, %s1188, %s1177
        $region52: #{tpu_custom_call.1} parent=39 // pred_fallthru
          _
      $region40: #{tpu_custom_call.1} parent=5 // pred_fallthru
        _
      %p1194 = scmp.le.s32.totalorder 2, %s18
      // Predicated region
      $region53: #{tpu_custom_call.1} parent=5 // pred_check
        %p1195 = pneg %p1194
      $region54: #{tpu_custom_call.1} parent=5 // pred_check_branch
        %1197 = sbr.rel (%p1195) target = $region56
      $region55: #{tpu_custom_call.1} parent=5 // pred_region
        %s1198 = ssub.s32 %s18, 2
        // Predicated region
        $region57: #{tpu_custom_call.1} parent=55 // pred_check
          %p1199 = pneg %p157
        $region58: #{tpu_custom_call.1} parent=55 // pred_check_branch
          %1201 = sbr.rel (%p1199) target = $region60
        $region59: #{tpu_custom_call.1} parent=55 // pred_region
          %s1202 = sand.u32 %s142, 1
          %s1203 = scalar_lea.sflag [#allocation8], %s1202
          %s1204 = sand.u32 %s142, 1
          %s1205 = smul.addr %s1204, 8
          %s1206 = scalar_lea.vmem [#allocation11], %s1205
          %1207 = dma.done %s1203, 128
        $region60: #{tpu_custom_call.1} parent=55 // pred_fallthru
          _
      $region56: #{tpu_custom_call.1} parent=5 // pred_fallthru
        _
    $region6: #{tpu_custom_call.1} parent=1 // loop_footer
      %s22 = sadd.s32 1, %s18
    $region7: #{tpu_custom_call.1} parent=1 // loop_footer_branch
      %17 = sbr.rel target = $region3
    $region8: #{tpu_custom_call.1} parent=1 // loop_exit
      _
    %1208 = vsyncpa [#allocation7], 1
    %s1209 = scalar_lea.sflag [#allocation7], 1
    %1210 = vsyncpa %s1209, 1
    %1211 = vsyncpa [#allocation10], 1
    %1212 = vsyncpa [#allocation8], 1
    %s1213 = scalar_lea.sflag [#allocation8], 1
    %1214 = vsyncpa %s1213, 1

</llo_original>
